<compile_context>
chip_gen: v7x
topology: tpu7x:2x2x1
jax: 0.10.0
libtpu: 0.0.40
codegen_flags: <defaults>
</compile_context>

<pallas_src>
import numpy as np
import jax
import jax.numpy as jnp
from jax.experimental import pallas as pl
from jax.experimental.pallas import tpu as pltpu

HIDDEN = 32      # hidden_dim == embedding_dim (small for the test)
CLS_PAD = 128    # merged-classifier lane padding (lane-dense output)


# ---------------------------------------------------------------------------
# Pallas kernels
# ---------------------------------------------------------------------------

def _gnn_branch_kernel(h_ref, ea_ref, g_ref, s_ref, p_ref, w_ref, v_ref, o_ref):
    """All GINE layers + folded-BN + ReLU + global_mean_pool for ONE branch."""
    x = h_ref[...]            # (Np, D)  node features
    ea = ea_ref[...]          # (Ep, D)  edge features
    g = g_ref[...]            # (Ep, Np) one-hot gather of source nodes
    s = s_ref[...]            # (Np, Ep) one-hot scatter-add to target nodes
    n_layers = v_ref.shape[0]
    for l in range(n_layers):                                  # static unroll
        msg = jnp.maximum(
            jnp.dot(g, x, preferred_element_type=jnp.float32) + ea, 0.0)
        agg = jnp.dot(s, msg, preferred_element_type=jnp.float32)
        h = x + agg                                            # (1 + eps) * x, eps = 0
        vl = v_ref[l]                                          # (4, D): b1, b2, bn_scale, bn_bias
        h1 = jnp.maximum(
            jnp.dot(h, w_ref[2 * l], preferred_element_type=jnp.float32) + vl[0:1],
            0.0)
        h2 = jnp.dot(h1, w_ref[2 * l + 1], preferred_element_type=jnp.float32) + vl[1:2]
        x = jnp.maximum(h2 * vl[2:3] + vl[3:4], 0.0)
    # global_mean_pool epilogue (averaging matmul), single final store
    o_ref[...] = jnp.dot(p_ref[...], x, preferred_element_type=jnp.float32)


def _heter_cls_kernel(x_ref, a_ref, w_ref, v_ref, cw_ref, cb_ref, o_ref):
    """CGIN (GINConv + BN + ReLU per layer) fused with the merged classifier."""
    x = x_ref[...]
    a = a_ref[...]
    n_layers = v_ref.shape[0]
    for l in range(n_layers):
        agg = jnp.dot(a, x, preferred_element_type=jnp.float32)
        h = x + agg                                            # eps = 0
        vl = v_ref[l]
        h1 = jnp.maximum(
            jnp.dot(h, w_ref[2 * l], preferred_element_type=jnp.float32) + vl[0:1],
            0.0)
        h2 = jnp.dot(h1, w_ref[2 * l + 1], preferred_element_type=jnp.float32) + vl[1:2]
        x = jnp.maximum(h2 * vl[2:3] + vl[3:4], 0.0)
    # merged lane-padded classifier: col 0 = classifier1, cols 1:3 = classifier2
    o_ref[...] = (jnp.dot(x, cw_ref[...], preferred_element_type=jnp.float32)
                  + cb_ref[...])


def run_branches(h, ea, g, s, p, w, v):
    """One pallas_call covering the 3 independent GNN branches (grid parallel)."""
    B, Np, D = h.shape
    Ep = ea.shape[1]
    G = p.shape[1]
    L2 = w.shape[1]
    L = v.shape[1]
    return pl.pallas_call(
        _gnn_branch_kernel,
        out_shape=jax.ShapeDtypeStruct((B, G, D), jnp.float32),
        grid=(B,),
        in_specs=[
            pl.BlockSpec((None, Np, D), lambda b: (b, 0, 0)),
            pl.BlockSpec((None, Ep, D), lambda b: (b, 0, 0)),
            pl.BlockSpec((None, Ep, Np), lambda b: (b, 0, 0)),
            pl.BlockSpec((None, Np, Ep), lambda b: (b, 0, 0)),
            pl.BlockSpec((None, G, Np), lambda b: (b, 0, 0)),
            pl.BlockSpec((None, L2, D, D), lambda b: (b, 0, 0, 0)),
            pl.BlockSpec((None, L, 4, D), lambda b: (b, 0, 0, 0)),
        ],
        out_specs=pl.BlockSpec((None, G, D), lambda b: (b, 0, 0)),
        compiler_params=pltpu.CompilerParams(
            dimension_semantics=("parallel",)),
    )(h, ea, g, s, p, w, v)


def run_heter_classifier(x, a, w, v, cw, cb):
    """CGIN + merged classifier in a single gridless VMEM kernel."""
    nh = x.shape[0]
    c = cw.shape[1]
    return pl.pallas_call(
        _heter_cls_kernel,
        out_shape=jax.ShapeDtypeStruct((nh, c), jnp.float32),
        in_specs=[pl.BlockSpec(memory_space=pltpu.MemorySpace.VMEM)
                  for _ in range(6)],
        out_specs=pl.BlockSpec(memory_space=pltpu.MemorySpace.VMEM),
    )(x, a, w, v, cw, cb)


# ---------------------------------------------------------------------------
# Deterministic parameter initialization (packed layout)
# ---------------------------------------------------------------------------

def _dense(key, fan_in, fan_out):
    kw, kb = jax.random.split(key)
    lim = 1.0 / np.sqrt(fan_in)
    w = jax.random.uniform(kw, (fan_in, fan_out), jnp.float32, -lim, lim)
    b = jax.random.uniform(kb, (1, fan_out), jnp.float32, -lim, lim)
    return w, b


def _bn_folded(key, dim):
    k1, k2, k3, k4 = jax.random.split(key, 4)
    gamma = jax.random.uniform(k1, (1, dim), jnp.float32, 0.8, 1.2)
    beta = 0.1 * jax.random.normal(k2, (1, dim), jnp.float32)
    rmean = 0.1 * jax.random.normal(k3, (1, dim), jnp.float32)
    rvar = jax.random.uniform(k4, (1, dim), jnp.float32, 0.5, 1.5)
    scale = gamma / jnp.sqrt(rvar + 1e-5)
    bias = beta - rmean * scale
    return scale, bias


def _packed_layers(key, num_layers, dim):
    """W: (2L, D, D) = [w1_0, w2_0, w1_1, ...];  V: (L, 4, D) = [b1,b2,bn_s,bn_b]."""
    ws, vs = [], []
    for i in range(num_layers):
        k1, k2, k3 = jax.random.split(jax.random.fold_in(key, i), 3)
        w1, b1 = _dense(k1, dim, dim)
        w2, b2 = _dense(k2, dim, dim)
        scale, bias = _bn_folded(k3, dim)
        ws += [w1, w2]
        vs.append(jnp.concatenate([b1, b2, scale, bias], axis=0))
    return jnp.stack(ws), jnp.stack(vs)


def _embedding_tables(key, sizes, dim):
    return [0.1 * jax.random.normal(jax.random.fold_in(key, i), (s, dim), jnp.float32)
            for i, s in enumerate(sizes)]


def init_gin_branch(key, num_node_features, num_edge_features,
                    hidden_dim, embedding_dim, num_layers):
    k_node, k_edge, k_layers = jax.random.split(key, 3)
    node_sizes = [120] if num_node_features == 1 else [120, 5, 12, 12, 10, 6, 7, 2, 2]
    edge_sizes = [5] if num_edge_features == 1 else [15, 6, 2]
    node_emb = _embedding_tables(k_node, node_sizes, embedding_dim)
    edge_emb = _embedding_tables(k_edge, edge_sizes, embedding_dim)
    W, V = _packed_layers(k_layers, num_layers, embedding_dim)
    return dict(node_emb=node_emb, edge_emb=edge_emb, W=W, V=V)


def init_cgin(key, num_features, hidden_dim, num_layers):
    # num_layers = 2  ->  exactly one GINConv layer (see CGIN.__init__)
    n_convs = 1 + max(num_layers - 2, 0)
    # TODO(synk): CGIN.self.linear is defined but never used in forward(); omitted.
    W, V = _packed_layers(key, n_convs, hidden_dim)
    return dict(W=W, V=V)


def init_merged_classifier(key, hidden_dim, nc1, nc2, pad_to=CLS_PAD):
    # Classifier.forward only applies fc2; both heads merged into one padded matmul.
    k1, k2 = jax.random.split(key)
    w1, b1 = _dense(k1, hidden_dim, nc1)
    w2, b2 = _dense(k2, hidden_dim, nc2)
    cw = jnp.zeros((hidden_dim, pad_to), jnp.float32)
    cw = cw.at[:, :nc1].set(w1).at[:, nc1:nc1 + nc2].set(w2)
    cb = jnp.zeros((1, pad_to), jnp.float32)
    cb = cb.at[:, :nc1].set(b1).at[:, nc1:nc1 + nc2].set(b2)
    return dict(cw=cw, cb=cb, nc1=nc1, nc2=nc2)


def init_cross_datasets_gin(key, hidden_dim, num_classes_1, num_classes_2):
    ks = jax.random.split(key, 5)
    return dict(
        motif_gnn=init_gin_branch(ks[0], 1, 1, hidden_dim, hidden_dim, 2),
        raw_gnn_1=init_gin_branch(ks[1], 9, 3, hidden_dim, hidden_dim, 2),
        raw_gnn_2=init_gin_branch(ks[2], 9, 3, hidden_dim, hidden_dim, 2),
        heter_gnn=init_cgin(ks[3], hidden_dim, hidden_dim, 2),
        classifier=init_merged_classifier(ks[4], hidden_dim, num_classes_1, num_classes_2),
    )


# ---------------------------------------------------------------------------
# Forward pass (glue + the two Pallas kernels)
# ---------------------------------------------------------------------------

def _embed(tables, idx):
    if idx.ndim == 1:
        return tables[0][idx]
    out = tables[0][idx[:, 0]]
    for i in range(1, len(tables)):
        out = out + tables[i][idx[:, i]]
    return out


def _pad8(n):
    return int(np.ceil(n / 8.0) * 8)


def prepare_branch(branch_params, x, edge_index, edge_attr, batch, num_graphs,
                   n_pad, e_pad):
    """Embedding lookups + padded gather/scatter/pool matrices for one branch."""
    h = _embed(branch_params["node_emb"], x)          # (N, D)
    ea = _embed(branch_params["edge_emb"], edge_attr)  # (E, D)
    n, d = h.shape
    e = ea.shape[0]
    src, dst = edge_index[0], edge_index[1]
    h_pad = jnp.zeros((n_pad, d), jnp.float32).at[:n].set(h)
    ea_pad = jnp.zeros((e_pad, d), jnp.float32).at[:e].set(ea)
    gm = jnp.zeros((e_pad, n_pad), jnp.float32).at[:e].set(
        jax.nn.one_hot(src, n_pad, dtype=jnp.float32))
    sm = jnp.zeros((n_pad, e_pad), jnp.float32).at[:, :e].set(
        jax.nn.one_hot(dst, n_pad, dtype=jnp.float32).T)
    pm = jax.nn.one_hot(batch, num_graphs, dtype=jnp.float32).T    # (G, N)
    pm = pm / jnp.maximum(pm.sum(axis=1, keepdims=True), 1.0)
    p_pad = jnp.zeros((num_graphs, n_pad), jnp.float32).at[:, :n].set(pm)
    return h_pad, ea_pad, gm, sm, p_pad


def cross_datasets_gin_forward(params, data, num_motifs, num_data1,
                               motif_data, raw_data_1, raw_data_2,
                               motif_mask, raw_mask_1, raw_mask_2):
    branches = (params["motif_gnn"], params["raw_gnn_1"], params["raw_gnn_2"])
    branch_data = (motif_data, raw_data_1, raw_data_2)

    # common padded sizes so the three branches can share one gridded kernel
    n_pad = _pad8(max(d[0].shape[0] for d in branch_data))
    e_pad = _pad8(max(d[1].shape[1] for d in branch_data))

    prepped = [prepare_branch(bp, *bd, n_pad, e_pad)
               for bp, bd in zip(branches, branch_data)]

    h_s = jnp.stack([p[0] for p in prepped])
    ea_s = jnp.stack([p[1] for p in prepped])
    gm_s = jnp.stack([p[2] for p in prepped])
    sm_s = jnp.stack([p[3] for p in prepped])
    pm_s = jnp.stack([p[4] for p in prepped])
    w_s = jnp.stack([bp["W"] for bp in branches])
    v_s = jnp.stack([bp["V"] for bp in branches])

    # --- kernel 1: all three GNN branches (layers + mean-pool fused) ---------
    branch_out = run_branches(h_s, ea_s, gm_s, sm_s, pm_s, w_s, v_s)  # (3, G, D)
    motif_out, raw_out_1, raw_out_2 = branch_out[0], branch_out[1], branch_out[2]

    # assemble heterogeneous node features (host-side static index placement)
    n_nodes = data["n_id"].shape[0]
    num_dim = branch_out.shape[-1]
    nh_pad = _pad8(n_nodes)
    node_feature = jnp.zeros((nh_pad, num_dim), jnp.float32)
    node_feature = node_feature.at[np.where(motif_mask)[0]].set(motif_out)
    node_feature = node_feature.at[np.where(raw_mask_1)[0]].set(raw_out_1)
    node_feature = node_feature.at[np.where(raw_mask_2)[0]].set(raw_out_2)

    src, dst = data["edge_index"][0], data["edge_index"][1]
    adj = jnp.zeros((nh_pad, nh_pad), jnp.float32).at[dst, src].add(1.0)

    # --- kernel 2: CGIN + merged (lane-padded) classifiers -------------------
    logits = run_heter_classifier(
        node_feature, adj,
        params["heter_gnn"]["W"], params["heter_gnn"]["V"],
        params["classifier"]["cw"], params["classifier"]["cb"])   # (nh_pad, 128)

    nc1, nc2 = params["classifier"]["nc1"], params["classifier"]["nc2"]
    n_id_front = np.asarray(data["n_id"])[: data["batch_size"]]
    idx1 = np.where((n_id_front < num_data1 + num_motifs) & (n_id_front >= num_motifs))[0]
    idx2 = np.where(n_id_front >= num_data1 + num_motifs)[0]

    pred1 = logits[idx1][:, :nc1]
    pred2 = logits[idx2][:, nc1:nc1 + nc2]
    return pred1, pred2


# ---------------------------------------------------------------------------
# Example run
# ---------------------------------------------------------------------------

if __name__ == "__main__":
    key = jax.random.PRNGKey(0)
    k_param, k_data = jax.random.split(key)
    params = init_cross_datasets_gin(k_param, HIDDEN, num_classes_1=1, num_classes_2=2)

    dk = list(jax.random.split(k_data, 12))

    # ---- motif dataset: 4 graphs, 10 nodes, 16 edges, scalar int features ----
    Nm, Em, Gm_graphs = 10, 16, 4
    motif_x = jax.random.randint(dk[0], (Nm,), 0, 120)
    motif_edge_index = jax.random.randint(dk[1], (2, Em), 0, Nm)
    motif_edge_attr = jax.random.randint(dk[2], (Em,), 0, 5)
    motif_batch = jnp.array([0, 0, 0, 1, 1, 2, 2, 2, 3, 3], jnp.int32)
    motif_data = (motif_x, motif_edge_index, motif_edge_attr, motif_batch, Gm_graphs)

    # ---- raw dataset 1: 4 graphs, 12 nodes, 18 edges, 9 / 3 int features ----
    n_f = np.array([120, 5, 12, 12, 10, 6, 7, 2, 2])
    e_f = np.array([15, 6, 2])
    N1, E1, G1 = 12, 18, 4
    raw_x_1 = jnp.stack([jax.random.randint(jax.random.fold_in(dk[3], i), (N1,), 0, int(n_f[i]))
                         for i in range(9)], axis=1)
    raw_edge_index_1 = jax.random.randint(dk[4], (2, E1), 0, N1)
    raw_edge_attr_1 = jnp.stack([jax.random.randint(jax.random.fold_in(dk[5], i), (E1,), 0, int(e_f[i]))
                                 for i in range(3)], axis=1)
    raw_batch_1 = jnp.array([0, 0, 0, 1, 1, 1, 2, 2, 2, 3, 3, 3], jnp.int32)
    raw_data_1 = (raw_x_1, raw_edge_index_1, raw_edge_attr_1, raw_batch_1, G1)

    # ---- raw dataset 2: same structure ----
    N2, E2, G2 = 12, 18, 4
    raw_x_2 = jnp.stack([jax.random.randint(jax.random.fold_in(dk[6], i), (N2,), 0, int(n_f[i]))
                         for i in range(9)], axis=1)
    raw_edge_index_2 = jax.random.randint(dk[7], (2, E2), 0, N2)
    raw_edge_attr_2 = jnp.stack([jax.random.randint(jax.random.fold_in(dk[8], i), (E2,), 0, int(e_f[i]))
                                 for i in range(3)], axis=1)
    raw_batch_2 = jnp.array([0, 0, 0, 1, 1, 1, 2, 2, 2, 3, 3, 3], jnp.int32)
    raw_data_2 = (raw_x_2, raw_edge_index_2, raw_edge_attr_2, raw_batch_2, G2)

    # ---- heterogeneous graph ("data"): 12 nodes, 24 edges ----
    num_motifs, num_data1 = 100, 200
    n_id = np.array([5, 150, 320, 101, 12, 310, 400, 250, 3, 7, 330, 180], np.int64)
    heter_edge_index = jax.random.randint(dk[9], (2, 24), 0, n_id.shape[0])
    data = dict(n_id=n_id, edge_index=heter_edge_index, batch_size=8)

    motif_mask = n_id < num_motifs                                        # 4 True
    raw_mask_1 = (n_id >= num_motifs) & (n_id < num_motifs + num_data1)   # 4 True
    raw_mask_2 = n_id >= num_motifs + num_data1                           # 4 True

    pred1, pred2 = cross_datasets_gin_forward(
        params, data, num_motifs, num_data1,
        motif_data, raw_data_1, raw_data_2,
        motif_mask, raw_mask_1, raw_mask_2)

    jax.block_until_ready((pred1, pred2))
    assert pred1.shape == (3, 1) and pred2.shape == (3, 2)
    print("KERNEL_OK")
</pallas_src>

<mosaic_0001>
module attributes {stable_mosaic.version = 11 : i64} {
  func.func @_gnn_branch_kernel(%arg0: i32, %arg1: memref<1x16x32xf32, #tpu.memory_space<vmem>>, %arg2: memref<1x24x32xf32, #tpu.memory_space<vmem>>, %arg3: memref<1x24x16xf32, #tpu.memory_space<vmem>>, %arg4: memref<1x16x24xf32, #tpu.memory_space<vmem>>, %arg5: memref<1x4x16xf32, #tpu.memory_space<vmem>>, %arg6: memref<1x4x32x32xf32, #tpu.memory_space<vmem>>, %arg7: memref<1x2x4x32xf32, #tpu.memory_space<vmem>>, %arg8: memref<1x4x32xf32, #tpu.memory_space<vmem>>) attributes {dimension_semantics = [#tpu.dimension_semantics<parallel>], iteration_bounds = array<i64: 3>, scalar_prefetch = 0 : i64, scratch_operands = 0 : i64, tpu.core_type = #tpu.core_type<tc>, window_params = [{transform_indices = @transform_0, window_bounds = array<i64: 1, 16, 32>}, {transform_indices = @transform_1, window_bounds = array<i64: 1, 24, 32>}, {transform_indices = @transform_2, window_bounds = array<i64: 1, 24, 16>}, {transform_indices = @transform_3, window_bounds = array<i64: 1, 16, 24>}, {transform_indices = @transform_4, window_bounds = array<i64: 1, 4, 16>}, {transform_indices = @transform_5, window_bounds = array<i64: 1, 4, 32, 32>}, {transform_indices = @transform_6, window_bounds = array<i64: 1, 2, 4, 32>}, {transform_indices = @transform_7, window_bounds = array<i64: 1, 4, 32>}]} {
    %c0 = arith.constant 0 : index
    %c0_0 = arith.constant 0 : index
    %c0_1 = arith.constant 0 : index
    %0 = vector.load %arg1[%c0, %c0_0, %c0_1] : memref<1x16x32xf32, #tpu.memory_space<vmem>>, vector<1x16x32xf32>
    %1 = vector.shape_cast %0 : vector<1x16x32xf32> to vector<16x32xf32>
    %c0_2 = arith.constant 0 : index
    %c0_3 = arith.constant 0 : index
    %c0_4 = arith.constant 0 : index
    %2 = vector.load %arg2[%c0_2, %c0_3, %c0_4] : memref<1x24x32xf32, #tpu.memory_space<vmem>>, vector<1x24x32xf32>
    %3 = vector.shape_cast %2 : vector<1x24x32xf32> to vector<24x32xf32>
    %c0_5 = arith.constant 0 : index
    %c0_6 = arith.constant 0 : index
    %c0_7 = arith.constant 0 : index
    %4 = vector.load %arg3[%c0_5, %c0_6, %c0_7] : memref<1x24x16xf32, #tpu.memory_space<vmem>>, vector<1x24x16xf32>
    %5 = vector.shape_cast %4 : vector<1x24x16xf32> to vector<24x16xf32>
    %c0_8 = arith.constant 0 : index
    %c0_9 = arith.constant 0 : index
    %c0_10 = arith.constant 0 : index
    %6 = vector.load %arg4[%c0_8, %c0_9, %c0_10] : memref<1x16x24xf32, #tpu.memory_space<vmem>>, vector<1x16x24xf32>
    %7 = vector.shape_cast %6 : vector<1x16x24xf32> to vector<16x24xf32>
    %cst = arith.constant dense<0.000000e+00> : vector<24x32xf32>
    %8 = tpu.matmul %5, %1, %cst {dimension_numbers = #tpu.dot_dimension_numbers<[1], [0], [0], [1], [0, 0, 1, 1], [], []>} : vector<24x16xf32>, vector<16x32xf32>, vector<24x32xf32> -> vector<24x32xf32>
    %9 = arith.addf %8, %3 : vector<24x32xf32>
    %cst_11 = arith.constant 0.000000e+00 : f32
    %10 = vector.broadcast %cst_11 : f32 to vector<24x32xf32>
    %11 = arith.maximumf %9, %10 : vector<24x32xf32>
    %cst_12 = arith.constant dense<0.000000e+00> : vector<16x32xf32>
    %12 = tpu.matmul %7, %11, %cst_12 {dimension_numbers = #tpu.dot_dimension_numbers<[1], [0], [0], [1], [0, 0, 1, 1], [], []>} : vector<16x24xf32>, vector<24x32xf32>, vector<16x32xf32> -> vector<16x32xf32>
    %13 = arith.addf %1, %12 : vector<16x32xf32>
    %c0_13 = arith.constant 0 : index
    %c0_14 = arith.constant 0 : index
    %c0_15 = arith.constant 0 : index
    %c0_16 = arith.constant 0 : index
    %14 = vector.load %arg7[%c0_13, %c0_14, %c0_15, %c0_16] : memref<1x2x4x32xf32, #tpu.memory_space<vmem>>, vector<1x1x4x32xf32>
    %15 = vector.shape_cast %14 : vector<1x1x4x32xf32> to vector<4x32xf32>
    %c0_17 = arith.constant 0 : index
    %c0_18 = arith.constant 0 : index
    %c0_19 = arith.constant 0 : index
    %c0_20 = arith.constant 0 : index
    %16 = vector.load %arg6[%c0_17, %c0_18, %c0_19, %c0_20] : memref<1x4x32x32xf32, #tpu.memory_space<vmem>>, vector<1x1x32x32xf32>
    %17 = vector.shape_cast %16 : vector<1x1x32x32xf32> to vector<32x32xf32>
    %cst_21 = arith.constant dense<0.000000e+00> : vector<16x32xf32>
    %18 = tpu.matmul %13, %17, %cst_21 {dimension_numbers = #tpu.dot_dimension_numbers<[1], [0], [0], [1], [0, 0, 1, 1], [], []>} : vector<16x32xf32>, vector<32x32xf32>, vector<16x32xf32> -> vector<16x32xf32>
    %19 = vector.extract_strided_slice %15 {offsets = [0, 0], sizes = [1, 32], strides = [1, 1]} : vector<4x32xf32> to vector<1x32xf32>
    %20 = vector.broadcast %19 : vector<1x32xf32> to vector<16x32xf32>
    %21 = arith.addf %18, %20 : vector<16x32xf32>
    %cst_22 = arith.constant 0.000000e+00 : f32
    %22 = vector.broadcast %cst_22 : f32 to vector<16x32xf32>
    %23 = arith.maximumf %21, %22 : vector<16x32xf32>
    %c0_23 = arith.constant 0 : index
    %c1 = arith.constant 1 : index
    %c0_24 = arith.constant 0 : index
    %c0_25 = arith.constant 0 : index
    %24 = vector.load %arg6[%c0_23, %c1, %c0_24, %c0_25] : memref<1x4x32x32xf32, #tpu.memory_space<vmem>>, vector<1x1x32x32xf32>
    %25 = vector.shape_cast %24 : vector<1x1x32x32xf32> to vector<32x32xf32>
    %cst_26 = arith.constant dense<0.000000e+00> : vector<16x32xf32>
    %26 = tpu.matmul %23, %25, %cst_26 {dimension_numbers = #tpu.dot_dimension_numbers<[1], [0], [0], [1], [0, 0, 1, 1], [], []>} : vector<16x32xf32>, vector<32x32xf32>, vector<16x32xf32> -> vector<16x32xf32>
    %27 = vector.extract_strided_slice %15 {offsets = [1, 0], sizes = [1, 32], strides = [1, 1]} : vector<4x32xf32> to vector<1x32xf32>
    %28 = vector.broadcast %27 : vector<1x32xf32> to vector<16x32xf32>
    %29 = arith.addf %26, %28 : vector<16x32xf32>
    %30 = vector.extract_strided_slice %15 {offsets = [2, 0], sizes = [1, 32], strides = [1, 1]} : vector<4x32xf32> to vector<1x32xf32>
    %31 = vector.broadcast %30 : vector<1x32xf32> to vector<16x32xf32>
    %32 = arith.mulf %29, %31 : vector<16x32xf32>
    %33 = vector.extract_strided_slice %15 {offsets = [3, 0], sizes = [1, 32], strides = [1, 1]} : vector<4x32xf32> to vector<1x32xf32>
    %34 = vector.broadcast %33 : vector<1x32xf32> to vector<16x32xf32>
    %35 = arith.addf %32, %34 : vector<16x32xf32>
    %cst_27 = arith.constant 0.000000e+00 : f32
    %36 = vector.broadcast %cst_27 : f32 to vector<16x32xf32>
    %37 = arith.maximumf %35, %36 : vector<16x32xf32>
    %cst_28 = arith.constant dense<0.000000e+00> : vector<24x32xf32>
    %38 = tpu.matmul %5, %37, %cst_28 {dimension_numbers = #tpu.dot_dimension_numbers<[1], [0], [0], [1], [0, 0, 1, 1], [], []>} : vector<24x16xf32>, vector<16x32xf32>, vector<24x32xf32> -> vector<24x32xf32>
    %39 = arith.addf %38, %3 : vector<24x32xf32>
    %cst_29 = arith.constant 0.000000e+00 : f32
    %40 = vector.broadcast %cst_29 : f32 to vector<24x32xf32>
    %41 = arith.maximumf %39, %40 : vector<24x32xf32>
    %cst_30 = arith.constant dense<0.000000e+00> : vector<16x32xf32>
    %42 = tpu.matmul %7, %41, %cst_30 {dimension_numbers = #tpu.dot_dimension_numbers<[1], [0], [0], [1], [0, 0, 1, 1], [], []>} : vector<16x24xf32>, vector<24x32xf32>, vector<16x32xf32> -> vector<16x32xf32>
    %43 = arith.addf %37, %42 : vector<16x32xf32>
    %c0_31 = arith.constant 0 : index
    %c1_32 = arith.constant 1 : index
    %c0_33 = arith.constant 0 : index
    %c0_34 = arith.constant 0 : index
    %44 = vector.load %arg7[%c0_31, %c1_32, %c0_33, %c0_34] : memref<1x2x4x32xf32, #tpu.memory_space<vmem>>, vector<1x1x4x32xf32>
    %45 = vector.shape_cast %44 : vector<1x1x4x32xf32> to vector<4x32xf32>
    %c0_35 = arith.constant 0 : index
    %c2 = arith.constant 2 : index
    %c0_36 = arith.constant 0 : index
    %c0_37 = arith.constant 0 : index
    %46 = vector.load %arg6[%c0_35, %c2, %c0_36, %c0_37] : memref<1x4x32x32xf32, #tpu.memory_space<vmem>>, vector<1x1x32x32xf32>
    %47 = vector.shape_cast %46 : vector<1x1x32x32xf32> to vector<32x32xf32>
    %cst_38 = arith.constant dense<0.000000e+00> : vector<16x32xf32>
    %48 = tpu.matmul %43, %47, %cst_38 {dimension_numbers = #tpu.dot_dimension_numbers<[1], [0], [0], [1], [0, 0, 1, 1], [], []>} : vector<16x32xf32>, vector<32x32xf32>, vector<16x32xf32> -> vector<16x32xf32>
    %49 = vector.extract_strided_slice %45 {offsets = [0, 0], sizes = [1, 32], strides = [1, 1]} : vector<4x32xf32> to vector<1x32xf32>
    %50 = vector.broadcast %49 : vector<1x32xf32> to vector<16x32xf32>
    %51 = arith.addf %48, %50 : vector<16x32xf32>
    %cst_39 = arith.constant 0.000000e+00 : f32
    %52 = vector.broadcast %cst_39 : f32 to vector<16x32xf32>
    %53 = arith.maximumf %51, %52 : vector<16x32xf32>
    %c0_40 = arith.constant 0 : index
    %c3 = arith.constant 3 : index
    %c0_41 = arith.constant 0 : index
    %c0_42 = arith.constant 0 : index
    %54 = vector.load %arg6[%c0_40, %c3, %c0_41, %c0_42] : memref<1x4x32x32xf32, #tpu.memory_space<vmem>>, vector<1x1x32x32xf32>
    %55 = vector.shape_cast %54 : vector<1x1x32x32xf32> to vector<32x32xf32>
    %cst_43 = arith.constant dense<0.000000e+00> : vector<16x32xf32>
    %56 = tpu.matmul %53, %55, %cst_43 {dimension_numbers = #tpu.dot_dimension_numbers<[1], [0], [0], [1], [0, 0, 1, 1], [], []>} : vector<16x32xf32>, vector<32x32xf32>, vector<16x32xf32> -> vector<16x32xf32>
    %57 = vector.extract_strided_slice %45 {offsets = [1, 0], sizes = [1, 32], strides = [1, 1]} : vector<4x32xf32> to vector<1x32xf32>
    %58 = vector.broadcast %57 : vector<1x32xf32> to vector<16x32xf32>
    %59 = arith.addf %56, %58 : vector<16x32xf32>
    %60 = vector.extract_strided_slice %45 {offsets = [2, 0], sizes = [1, 32], strides = [1, 1]} : vector<4x32xf32> to vector<1x32xf32>
    %61 = vector.broadcast %60 : vector<1x32xf32> to vector<16x32xf32>
    %62 = arith.mulf %59, %61 : vector<16x32xf32>
    %63 = vector.extract_strided_slice %45 {offsets = [3, 0], sizes = [1, 32], strides = [1, 1]} : vector<4x32xf32> to vector<1x32xf32>
    %64 = vector.broadcast %63 : vector<1x32xf32> to vector<16x32xf32>
    %65 = arith.addf %62, %64 : vector<16x32xf32>
    %cst_44 = arith.constant 0.000000e+00 : f32
    %66 = vector.broadcast %cst_44 : f32 to vector<16x32xf32>
    %67 = arith.maximumf %65, %66 : vector<16x32xf32>
    %c0_45 = arith.constant 0 : index
    %c0_46 = arith.constant 0 : index
    %c0_47 = arith.constant 0 : index
    %68 = vector.load %arg5[%c0_45, %c0_46, %c0_47] : memref<1x4x16xf32, #tpu.memory_space<vmem>>, vector<1x4x16xf32>
    %69 = vector.shape_cast %68 : vector<1x4x16xf32> to vector<4x16xf32>
    %cst_48 = arith.constant dense<0.000000e+00> : vector<4x32xf32>
    %70 = tpu.matmul %69, %67, %cst_48 {dimension_numbers = #tpu.dot_dimension_numbers<[1], [0], [0], [1], [0, 0, 1, 1], [], []>} : vector<4x16xf32>, vector<16x32xf32>, vector<4x32xf32> -> vector<4x32xf32>
    %c0_49 = arith.constant 0 : index
    %c0_50 = arith.constant 0 : index
    %c0_51 = arith.constant 0 : index
    %71 = vector.load %arg8[%c0_49, %c0_50, %c0_51] : memref<1x4x32xf32, #tpu.memory_space<vmem>>, vector<1x4x32xf32>
    %72 = vector.shape_cast %71 : vector<1x4x32xf32> to vector<4x32xf32>
    %73 = vector.shape_cast %70 : vector<4x32xf32> to vector<1x4x32xf32>
    tpu.vector_store %arg8[%c0_49, %c0_50, %c0_51], %73 {strides = array<i32>} : memref<1x4x32xf32, #tpu.memory_space<vmem>>, vector<1x4x32xf32>,
    return
  }
  func.func @transform_0(%arg0: i32) -> (i32, i32, i32) {
    %c0_i32 = arith.constant 0 : i32
    %c0_i32_0 = arith.constant 0 : i32
    %c0_i32_1 = arith.constant 0 : i32
    return %arg0, %c0_i32, %c0_i32_0 : i32, i32, i32
  }
  func.func @transform_1(%arg0: i32) -> (i32, i32, i32) {
    %c0_i32 = arith.constant 0 : i32
    %c0_i32_0 = arith.constant 0 : i32
    %c0_i32_1 = arith.constant 0 : i32
    return %arg0, %c0_i32, %c0_i32_0 : i32, i32, i32
  }
  func.func @transform_2(%arg0: i32) -> (i32, i32, i32) {
    %c0_i32 = arith.constant 0 : i32
    %c0_i32_0 = arith.constant 0 : i32
    %c0_i32_1 = arith.constant 0 : i32
    return %arg0, %c0_i32, %c0_i32_0 : i32, i32, i32
  }
  func.func @transform_3(%arg0: i32) -> (i32, i32, i32) {
    %c0_i32 = arith.constant 0 : i32
    %c0_i32_0 = arith.constant 0 : i32
    %c0_i32_1 = arith.constant 0 : i32
    return %arg0, %c0_i32, %c0_i32_0 : i32, i32, i32
  }
  func.func @transform_4(%arg0: i32) -> (i32, i32, i32) {
    %c0_i32 = arith.constant 0 : i32
    %c0_i32_0 = arith.constant 0 : i32
    %c0_i32_1 = arith.constant 0 : i32
    return %arg0, %c0_i32, %c0_i32_0 : i32, i32, i32
  }
  func.func @transform_5(%arg0: i32) -> (i32, i32, i32, i32) {
    %c0_i32 = arith.constant 0 : i32
    %c0_i32_0 = arith.constant 0 : i32
    %c0_i32_1 = arith.constant 0 : i32
    %c0_i32_2 = arith.constant 0 : i32
    return %arg0, %c0_i32, %c0_i32_0, %c0_i32_1 : i32, i32, i32, i32
  }
  func.func @transform_6(%arg0: i32) -> (i32, i32, i32, i32) {
    %c0_i32 = arith.constant 0 : i32
    %c0_i32_0 = arith.constant 0 : i32
    %c0_i32_1 = arith.constant 0 : i32
    %c0_i32_2 = arith.constant 0 : i32
    return %arg0, %c0_i32, %c0_i32_0, %c0_i32_1 : i32, i32, i32, i32
  }
  func.func @transform_7(%arg0: i32) -> (i32, i32, i32) {
    %c0_i32 = arith.constant 0 : i32
    %c0_i32_0 = arith.constant 0 : i32
    %c0_i32_1 = arith.constant 0 : i32
    return %arg0, %c0_i32, %c0_i32_0 : i32, i32, i32
  }
}

</mosaic_0001>

<llo_original>
// kernel: tpu_custom_call.1
$region0: #{tpu_custom_call.1}
  #allocation0 [shape = 'u32[]', space=smem, size = 0x4, offset = 0x4, fixed_abs, tag = 'smem constant byte address 0x4 - core index']
  #allocation1 [shape = 'u32[144,128]{1,0:T(1,128)}', space=vmem, size = 0x12000, scoped, tag = 'internal scratch']
  %s0 = inlined_call_operand.vmem [shape: f32[3,16,32], index: 0, kind: input, shape index: {}]
  %s1 = inlined_call_operand.vmem [shape: f32[3,24,32], index: 1, kind: input, shape index: {}]
  %s2 = inlined_call_operand.vmem [shape: f32[3,24,16], index: 2, kind: input, shape index: {}]
  %s3 = inlined_call_operand.hbm [shape: f32[3,16,24], index: 3, kind: input, shape index: {}]
  %s4 = inlined_call_operand.vmem [shape: f32[3,4,16], index: 4, kind: input, shape index: {}]
  %s5 = inlined_call_operand.hbm [shape: f32[3,4,32,32], index: 5, kind: input, shape index: {}]
  %s6 = inlined_call_operand.hbm [shape: f32[3,2,4,32], index: 6, kind: input, shape index: {}]
  %s7 = inlined_call_operand.hbm [shape: f32[3,4,32], index: 7, kind: output, shape index: {}]
  %s8 = sld [smem:[#allocation0]]
  $region73: #{tpu_custom_call.1} parent=0
    _
  %s10 = ssub.s32 1, %s8
  %s11 = scalar_select 0, %s10, %s8
  $region1: #{tpu_custom_call.1} parent=0
    #allocation2 [shape = 'u8[16384]{0}', space=vmem, size = 0x4000, scoped, tag = 'input window, operand 3']
    #allocation3 [shape = 's32[2]{0}', space=sflag, size = 0x8, scoped, tag = 'scoped memory for tpu_custom_call.1']
    #allocation4 [shape = 's32[2]{0}', space=sflag, size = 0x8, scoped, tag = 'scoped memory for tpu_custom_call.1']
    #allocation5 [shape = 'u8[131072]{0}', space=vmem, size = 0x20000, scoped, tag = 'input window, operand 5']
    #allocation6 [shape = 's32[2]{0}', space=sflag, size = 0x8, scoped, tag = 'scoped memory for tpu_custom_call.1']
    #allocation7 [shape = 'u8[8192]{0}', space=vmem, size = 0x2000, scoped, tag = 'input window, operand 6']
    #allocation8 [shape = 'u8[4096]{0}', space=vmem, size = 0x1000, scoped, tag = 'output window, operand 0']
    %12 = vsyncpa [#allocation3], 0
    %s13 = scalar_lea.sflag [#allocation3], 1
    %14 = vsyncpa %s13, 0
    %15 = vsyncpa [#allocation6], 0
    %s16 = scalar_lea.sflag [#allocation6], 1
    %17 = vsyncpa %s16, 0
    %18 = vsyncpa [#allocation4], 0
    %s19 = scalar_lea.sflag [#allocation4], 1
    %20 = vsyncpa %s19, 0
    loop: start=0, step=1, limit=5
    $region2: #{tpu_custom_call.1} parent=1 // loop_pre_header
      _
    $region3: #{tpu_custom_call.1} parent=1 // loop_header
      %s22 = sphi 0, %s26
      %p23 = scmp.ge.s32.totalorder %s22, 5
      %s32 = sphi 0, %s34
      %s35 = sphi 0, %s32
      %s36 = sphi 0, %s35
      %s52 = sphi 0, %s36
      %s58 = sphi 0, %s60
      %s61 = sphi 0, %s58
      %s62 = sphi 0, %s61
      %s78 = sphi 0, %s62
      %s84 = sphi 0, %s86
      %s87 = sphi 0, %s84
      %s88 = sphi 0, %s87
      %s104 = sphi 0, %s88
      %s110 = sphi 0, %s112
      %s113 = sphi 0, %s110
      %s114 = sphi 0, %s113
      %s130 = sphi 0, %s114
      %s136 = sphi 0, %s138
      %s139 = sphi 0, %s136
      %s140 = sphi 0, %s139
      %s156 = sphi 0, %s140
      %s162 = sphi 0, %s164
      %s165 = sphi 0, %s162
      %s166 = sphi 0, %s165
      %s182 = sphi 0, %s166
      %s188 = sphi 0, %s190
      %s191 = sphi 0, %s188
      %s192 = sphi 0, %s191
      %s208 = sphi 0, %s192
      %s214 = sphi 0, %s216
      %s217 = sphi 0, %s214
      %s218 = sphi 0, %s217
      %s234 = sphi 0, %s218
    $region4: #{tpu_custom_call.1} parent=1 // loop_header_branch
      %25 = sbr.rel (%p23) target = $region8
    $region5: #{tpu_custom_call.1} parent=1 // loop_body
      %s27 = ssub.s32 %s22, 1
      %s28 = ssub.s32 %s22, 2
      %s29 = sadd.s32 %s22, 1
      %s30 = ssub.s32 %s22, %s29
      %p31 = scmp.eq.s32.totalorder %s30, 0
      %s33 = sadd.s32 %s32, 1
      %s34 = scalar_select %p31, %s32, %s33
      %p37 = pneg %p31
      %p38 = scmp.eq.s32.totalorder %s22, 2
      %p39 = por %p37, %p38
      %p40 = scmp.ne.s32.totalorder %s32, %s35
      %p41 = scmp.eq.s32.totalorder %s22, 0
      %p42 = por %p40, %p41
      %p43 = scmp.ne.s32.totalorder %s32, %s35
      %p44 = scmp.eq.s32.totalorder %s27, 2
      %p45 = por %p43, %p44
      %p46 = scmp.ne.s32.totalorder %s35, %s36
      %p47 = scmp.eq.s32.totalorder %s27, 0
      %p48 = por %p46, %p47
      %p49 = scmp.ne.s32.totalorder %s35, %s36
      %p50 = scmp.eq.s32.totalorder %s28, 2
      %p51 = por %p49, %p50
      %p53 = scmp.ne.s32.totalorder %s36, %s52
      %p54 = scmp.eq.s32.totalorder %s28, 0
      %p55 = por %p53, %p54
      %s56 = ssub.s32 %s22, %s29
      %p57 = scmp.eq.s32.totalorder %s56, 0
      %s59 = sadd.s32 %s58, 1
      %s60 = scalar_select %p57, %s58, %s59
      %p63 = pneg %p57
      %p64 = scmp.eq.s32.totalorder %s22, 2
      %p65 = por %p63, %p64
      %p66 = scmp.ne.s32.totalorder %s58, %s61
      %p67 = scmp.eq.s32.totalorder %s22, 0
      %p68 = por %p66, %p67
      %p69 = scmp.ne.s32.totalorder %s58, %s61
      %p70 = scmp.eq.s32.totalorder %s27, 2
      %p71 = por %p69, %p70
      %p72 = scmp.ne.s32.totalorder %s61, %s62
      %p73 = scmp.eq.s32.totalorder %s27, 0
      %p74 = por %p72, %p73
      %p75 = scmp.ne.s32.totalorder %s61, %s62
      %p76 = scmp.eq.s32.totalorder %s28, 2
      %p77 = por %p75, %p76
      %p79 = scmp.ne.s32.totalorder %s62, %s78
      %p80 = scmp.eq.s32.totalorder %s28, 0
      %p81 = por %p79, %p80
      %s82 = ssub.s32 %s22, %s29
      %p83 = scmp.eq.s32.totalorder %s82, 0
      %s85 = sadd.s32 %s84, 1
      %s86 = scalar_select %p83, %s84, %s85
      %p89 = pneg %p83
      %p90 = scmp.eq.s32.totalorder %s22, 2
      %p91 = por %p89, %p90
      %p92 = scmp.ne.s32.totalorder %s84, %s87
      %p93 = scmp.eq.s32.totalorder %s22, 0
      %p94 = por %p92, %p93
      %p95 = scmp.ne.s32.totalorder %s84, %s87
      %p96 = scmp.eq.s32.totalorder %s27, 2
      %p97 = por %p95, %p96
      %p98 = scmp.ne.s32.totalorder %s87, %s88
      %p99 = scmp.eq.s32.totalorder %s27, 0
      %p100 = por %p98, %p99
      %p101 = scmp.ne.s32.totalorder %s87, %s88
      %p102 = scmp.eq.s32.totalorder %s28, 2
      %p103 = por %p101, %p102
      %p105 = scmp.ne.s32.totalorder %s88, %s104
      %p106 = scmp.eq.s32.totalorder %s28, 0
      %p107 = por %p105, %p106
      %s108 = ssub.s32 %s22, %s29
      %p109 = scmp.eq.s32.totalorder %s108, 0
      %s111 = sadd.s32 %s110, 1
      %s112 = scalar_select %p109, %s110, %s111
      %p115 = pneg %p109
      %p116 = scmp.eq.s32.totalorder %s22, 2
      %p117 = por %p115, %p116
      %p118 = scmp.ne.s32.totalorder %s110, %s113
      %p119 = scmp.eq.s32.totalorder %s22, 0
      %p120 = por %p118, %p119
      %p121 = scmp.ne.s32.totalorder %s110, %s113
      %p122 = scmp.eq.s32.totalorder %s27, 2
      %p123 = por %p121, %p122
      %p124 = scmp.ne.s32.totalorder %s113, %s114
      %p125 = scmp.eq.s32.totalorder %s27, 0
      %p126 = por %p124, %p125
      %p127 = scmp.ne.s32.totalorder %s113, %s114
      %p128 = scmp.eq.s32.totalorder %s28, 2
      %p129 = por %p127, %p128
      %p131 = scmp.ne.s32.totalorder %s114, %s130
      %p132 = scmp.eq.s32.totalorder %s28, 0
      %p133 = por %p131, %p132
      %s134 = ssub.s32 %s22, %s29
      %p135 = scmp.eq.s32.totalorder %s134, 0
      %s137 = sadd.s32 %s136, 1
      %s138 = scalar_select %p135, %s136, %s137
      %p141 = pneg %p135
      %p142 = scmp.eq.s32.totalorder %s22, 2
      %p143 = por %p141, %p142
      %p144 = scmp.ne.s32.totalorder %s136, %s139
      %p145 = scmp.eq.s32.totalorder %s22, 0
      %p146 = por %p144, %p145
      %p147 = scmp.ne.s32.totalorder %s136, %s139
      %p148 = scmp.eq.s32.totalorder %s27, 2
      %p149 = por %p147, %p148
      %p150 = scmp.ne.s32.totalorder %s139, %s140
      %p151 = scmp.eq.s32.totalorder %s27, 0
      %p152 = por %p150, %p151
      %p153 = scmp.ne.s32.totalorder %s139, %s140
      %p154 = scmp.eq.s32.totalorder %s28, 2
      %p155 = por %p153, %p154
      %p157 = scmp.ne.s32.totalorder %s140, %s156
      %p158 = scmp.eq.s32.totalorder %s28, 0
      %p159 = por %p157, %p158
      %s160 = ssub.s32 %s22, %s29
      %p161 = scmp.eq.s32.totalorder %s160, 0
      %s163 = sadd.s32 %s162, 1
      %s164 = scalar_select %p161, %s162, %s163
      %p167 = pneg %p161
      %p168 = scmp.eq.s32.totalorder %s22, 2
      %p169 = por %p167, %p168
      %p170 = scmp.ne.s32.totalorder %s162, %s165
      %p171 = scmp.eq.s32.totalorder %s22, 0
      %p172 = por %p170, %p171
      %p173 = scmp.ne.s32.totalorder %s162, %s165
      %p174 = scmp.eq.s32.totalorder %s27, 2
      %p175 = por %p173, %p174
      %p176 = scmp.ne.s32.totalorder %s165, %s166
      %p177 = scmp.eq.s32.totalorder %s27, 0
      %p178 = por %p176, %p177
      %p179 = scmp.ne.s32.totalorder %s165, %s166
      %p180 = scmp.eq.s32.totalorder %s28, 2
      %p181 = por %p179, %p180
      %p183 = scmp.ne.s32.totalorder %s166, %s182
      %p184 = scmp.eq.s32.totalorder %s28, 0
      %p185 = por %p183, %p184
      %s186 = ssub.s32 %s22, %s29
      %p187 = scmp.eq.s32.totalorder %s186, 0
      %s189 = sadd.s32 %s188, 1
      %s190 = scalar_select %p187, %s188, %s189
      %p193 = pneg %p187
      %p194 = scmp.eq.s32.totalorder %s22, 2
      %p195 = por %p193, %p194
      %p196 = scmp.ne.s32.totalorder %s188, %s191
      %p197 = scmp.eq.s32.totalorder %s22, 0
      %p198 = por %p196, %p197
      %p199 = scmp.ne.s32.totalorder %s188, %s191
      %p200 = scmp.eq.s32.totalorder %s27, 2
      %p201 = por %p199, %p200
      %p202 = scmp.ne.s32.totalorder %s191, %s192
      %p203 = scmp.eq.s32.totalorder %s27, 0
      %p204 = por %p202, %p203
      %p205 = scmp.ne.s32.totalorder %s191, %s192
      %p206 = scmp.eq.s32.totalorder %s28, 2
      %p207 = por %p205, %p206
      %p209 = scmp.ne.s32.totalorder %s192, %s208
      %p210 = scmp.eq.s32.totalorder %s28, 0
      %p211 = por %p209, %p210
      %s212 = ssub.s32 %s22, %s29
      %p213 = scmp.eq.s32.totalorder %s212, 0
      %s215 = sadd.s32 %s214, 1
      %s216 = scalar_select %p213, %s214, %s215
      %p219 = pneg %p213
      %p220 = scmp.eq.s32.totalorder %s22, 2
      %p221 = por %p219, %p220
      %p222 = scmp.ne.s32.totalorder %s214, %s217
      %p223 = scmp.eq.s32.totalorder %s22, 0
      %p224 = por %p222, %p223
      %p225 = scmp.ne.s32.totalorder %s214, %s217
      %p226 = scmp.eq.s32.totalorder %s27, 2
      %p227 = por %p225, %p226
      %p228 = scmp.ne.s32.totalorder %s217, %s218
      %p229 = scmp.eq.s32.totalorder %s27, 0
      %p230 = por %p228, %p229
      %p231 = scmp.ne.s32.totalorder %s217, %s218
      %p232 = scmp.eq.s32.totalorder %s28, 2
      %p233 = por %p231, %p232
      %p235 = scmp.ne.s32.totalorder %s218, %s234
      %p236 = scmp.eq.s32.totalorder %s28, 0
      %p237 = por %p235, %p236
      %p238 = scmp.le.s32.totalorder 1, %s22
      %p239 = scmp.lt.s32.totalorder %s22, 4
      %p240 = pnand %p238, %p239
      %p241 = pneg %p240
      // Predicated region
      $region9: #{tpu_custom_call.1} parent=5 // pred_check
        _
      $region10: #{tpu_custom_call.1} parent=5 // pred_check_branch
        %243 = sbr.rel (%p240) target = $region12
      $region11: #{tpu_custom_call.1} parent=5 // pred_region
        %s244 = ssub.s32 %s22, 1
      $region12: #{tpu_custom_call.1} parent=5 // pred_fallthru
        _
      %p245 = scmp.lt.s32.totalorder %s22, 3
      // Predicated region
      $region13: #{tpu_custom_call.1} parent=5 // pred_check
        %p246 = pneg %p245
      $region14: #{tpu_custom_call.1} parent=5 // pred_check_branch
        %248 = sbr.rel (%p246) target = $region16
      $region15: #{tpu_custom_call.1} parent=5 // pred_region
        // Predicated region
        $region17: #{tpu_custom_call.1} parent=15 // pred_check
          %p249 = pneg %p42
        $region18: #{tpu_custom_call.1} parent=15 // pred_check_branch
          %251 = sbr.rel (%p249) target = $region20
        $region19: #{tpu_custom_call.1} parent=15 // pred_region
          %p252 = scmp.lt.s32.totalorder %s22, 2
          %s253 = scalar_select %p252, %s22, 2
          %s254 = smul.addr %s253, 2
          %s255 = smul.addr %s254, 8
          %s256 = scalar_lea.vmem %s0, %s255
        $region20: #{tpu_custom_call.1} parent=15 // pred_fallthru
          _
        // Predicated region
        $region21: #{tpu_custom_call.1} parent=15 // pred_check
          %p257 = pneg %p68
        $region22: #{tpu_custom_call.1} parent=15 // pred_check_branch
          %259 = sbr.rel (%p257) target = $region24
        $region23: #{tpu_custom_call.1} parent=15 // pred_region
          %p260 = scmp.lt.s32.totalorder %s22, 2
          %s261 = scalar_select %p260, %s22, 2
          %s262 = smul.addr %s261, 3
          %s263 = smul.addr %s262, 8
          %s264 = scalar_lea.vmem %s1, %s263
        $region24: #{tpu_custom_call.1} parent=15 // pred_fallthru
          _
        // Predicated region
        $region25: #{tpu_custom_call.1} parent=15 // pred_check
          %p265 = pneg %p94
        $region26: #{tpu_custom_call.1} parent=15 // pred_check_branch
          %267 = sbr.rel (%p265) target = $region28
        $region27: #{tpu_custom_call.1} parent=15 // pred_region
          %p268 = scmp.lt.s32.totalorder %s22, 2
          %s269 = scalar_select %p268, %s22, 2
          %s270 = smul.addr %s269, 3
          %s271 = smul.addr %s270, 8
          %s272 = scalar_lea.vmem %s2, %s271
        $region28: #{tpu_custom_call.1} parent=15 // pred_fallthru
          _
        // Predicated region
        $region29: #{tpu_custom_call.1} parent=15 // pred_check
          %p273 = pneg %p120
        $region30: #{tpu_custom_call.1} parent=15 // pred_check_branch
          %275 = sbr.rel (%p273) target = $region32
        $region31: #{tpu_custom_call.1} parent=15 // pred_region
          %s276 = sand.u32 %s110, 1
          %s277 = scalar_lea.sflag [#allocation3], %s276
          %s278 = sand.u32 %s110, 1
          %s279 = smul.addr %s278, 16
          %s280 = scalar_lea.vmem [#allocation2], %s279
          %s282 = ssub.s32 256, 256
          %283 = vsyncadd %s277, %s282
          %s284 = smul.addr %s22, 2
          %s285 = smul.addr %s284, 128
          %s286 = scalar_lea.hbm %s3, %s285
          %s287 = sshll.u32 %s280, 4
          %s288 = int_to_ptr.vmem [resolvable:$true] %s287
          %293 = dma.hbm_to_vmem [thread:$0]  %s286, 256, %s288, %s277, 128, 128, 8
        $region32: #{tpu_custom_call.1} parent=15 // pred_fallthru
          _
        // Predicated region
        $region33: #{tpu_custom_call.1} parent=15 // pred_check
          %p294 = pneg %p146
        $region34: #{tpu_custom_call.1} parent=15 // pred_check_branch
          %296 = sbr.rel (%p294) target = $region36
        $region35: #{tpu_custom_call.1} parent=15 // pred_region
          %p297 = scmp.lt.s32.totalorder %s22, 2
          %s298 = scalar_select %p297, %s22, 2
          %s299 = smul.addr %s298, 4
          %s300 = scalar_lea.vmem %s4, %s299
        $region36: #{tpu_custom_call.1} parent=15 // pred_fallthru
          _
        // Predicated region
        $region37: #{tpu_custom_call.1} parent=15 // pred_check
          %p301 = pneg %p172
        $region38: #{tpu_custom_call.1} parent=15 // pred_check_branch
          %303 = sbr.rel (%p301) target = $region40
        $region39: #{tpu_custom_call.1} parent=15 // pred_region
          %s304 = sand.u32 %s22, 1
          %s305 = scalar_lea.sflag [#allocation6], %s304
          %s306 = sand.u32 %s162, 1
          %s307 = smul.addr %s306, 128
          %s308 = scalar_lea.vmem [#allocation5], %s307
          %s310 = ssub.s32 2048, 2048
          %311 = vsyncadd %s305, %s310
          %s312 = smul.addr %s22, 16
          %s313 = smul.addr %s312, 128
          %s314 = scalar_lea.hbm %s5, %s313
          %s315 = sshll.u32 %s308, 4
          %s316 = int_to_ptr.vmem [resolvable:$true] %s315
          %321 = dma.hbm_to_vmem [thread:$0]  %s314, 2048, %s316, %s305, 128, 128, 8
        $region40: #{tpu_custom_call.1} parent=15 // pred_fallthru
          _
        // Predicated region
        $region41: #{tpu_custom_call.1} parent=15 // pred_check
          %p322 = pneg %p198
        $region42: #{tpu_custom_call.1} parent=15 // pred_check_branch
          %324 = sbr.rel (%p322) target = $region44
        $region43: #{tpu_custom_call.1} parent=15 // pred_region
          %s325 = sand.u32 %s22, 1
          %s326 = scalar_lea.sflag [#allocation6], %s325
          %s327 = sand.u32 %s188, 1
          %s328 = smul.addr %s327, 8
          %s329 = scalar_lea.vmem [#allocation7], %s328
          %s331 = ssub.s32 128, 128
          %332 = vsyncadd %s326, %s331
          %s333 = smul.addr %s22, 2
          %s334 = smul.addr %s333, 64
          %s335 = scalar_lea.hbm %s6, %s334
          %s336 = sshll.u32 %s329, 4
          %s337 = int_to_ptr.vmem [resolvable:$true] %s336
          %342 = dma.hbm_to_vmem [thread:$0]  %s335, 128, %s337, %s326, 64, 64, 4
        $region44: #{tpu_custom_call.1} parent=15 // pred_fallthru
          _
      $region16: #{tpu_custom_call.1} parent=5 // pred_fallthru
        _
      %p343 = scmp.le.s32.totalorder 1, %s22
      %p344 = scmp.lt.s32.totalorder %s22, 4
      %p345 = pnand %p343, %p344
      %p346 = pneg %p345
      // Predicated region
      $region45: #{tpu_custom_call.1} parent=5 // pred_check
        _
      $region46: #{tpu_custom_call.1} parent=5 // pred_check_branch
        %348 = sbr.rel (%p345) target = $region48
      $region47: #{tpu_custom_call.1} parent=5 // pred_region
        %s349 = ssub.s32 %s22, 1
        %s350 = sand.u32 %s113, 1
        %s351 = scalar_lea.sflag [#allocation3], %s350
        %s352 = sand.u32 %s113, 1
        %s353 = smul.addr %s352, 16
        %s354 = scalar_lea.vmem [#allocation2], %s353
        // Predicated region
        $region49: #{tpu_custom_call.1} parent=47 // pred_check
          %p355 = pneg %p126
        $region50: #{tpu_custom_call.1} parent=47 // pred_check_branch
          %357 = sbr.rel (%p355) target = $region52
        $region51: #{tpu_custom_call.1} parent=47 // pred_region
          %358 = dma.done %s351, 256
        $region52: #{tpu_custom_call.1} parent=47 // pred_fallthru
          _
        %s359 = sand.u32 %s27, 1
        %s360 = scalar_lea.sflag [#allocation6], %s359
        %s361 = sand.u32 %s165, 1
        %s362 = smul.addr %s361, 128
        %s363 = scalar_lea.vmem [#allocation5], %s362
        // Predicated region
        $region53: #{tpu_custom_call.1} parent=47 // pred_check
          %p364 = pneg %p178
        $region54: #{tpu_custom_call.1} parent=47 // pred_check_branch
          %366 = sbr.rel (%p364) target = $region56
        $region55: #{tpu_custom_call.1} parent=47 // pred_region
          %367 = dma.done %s360, 2048
        $region56: #{tpu_custom_call.1} parent=47 // pred_fallthru
          _
        %s368 = sand.u32 %s27, 1
        %s369 = scalar_lea.sflag [#allocation6], %s368
        %s370 = sand.u32 %s191, 1
        %s371 = smul.addr %s370, 8
        %s372 = scalar_lea.vmem [#allocation7], %s371
        // Predicated region
        $region57: #{tpu_custom_call.1} parent=47 // pred_check
          %p373 = pneg %p204
        $region58: #{tpu_custom_call.1} parent=47 // pred_check_branch
          %375 = sbr.rel (%p373) target = $region60
        $region59: #{tpu_custom_call.1} parent=47 // pred_region
          %376 = dma.done %s369, 128
        $region60: #{tpu_custom_call.1} parent=47 // pred_fallthru
          _
        %p377 = scmp.lt.s32.totalorder %s27, 2
        %s378 = scalar_select %p377, %s27, 2
        %s379 = smul.addr %s378, 2
        %s380 = smul.addr %s379, 8
        %s381 = scalar_lea.vmem %s0, %s380
        %p382 = pneg %p48
        %p383 = pneg %p45
        %p384 = scmp.lt.s32.totalorder %s27, 2
        %s385 = scalar_select %p384, %s27, 2
        %s386 = smul.addr %s385, 3
        %s387 = smul.addr %s386, 8
        %s388 = scalar_lea.vmem %s1, %s387
        %p389 = pneg %p74
        %p390 = pneg %p71
        %p391 = scmp.lt.s32.totalorder %s27, 2
        %s392 = scalar_select %p391, %s27, 2
        %s393 = smul.addr %s392, 3
        %s394 = smul.addr %s393, 8
        %s395 = scalar_lea.vmem %s2, %s394
        %p396 = pneg %p100
        %p397 = pneg %p97
        %s398 = sand.u32 %s113, 1
        %s399 = scalar_lea.sflag [#allocation3], %s398
        %s400 = sand.u32 %s113, 1
        %s401 = smul.addr %s400, 16
        %s402 = scalar_lea.vmem [#allocation2], %s401
        %p403 = pneg %p126
        %p404 = pneg %p123
        %p405 = scmp.lt.s32.totalorder %s27, 2
        %s406 = scalar_select %p405, %s27, 2
        %s407 = smul.addr %s406, 4
        %s408 = scalar_lea.vmem %s4, %s407
        %p409 = pneg %p152
        %p410 = pneg %p149
        %s411 = sand.u32 %s27, 1
        %s412 = scalar_lea.sflag [#allocation6], %s411
        %s413 = sand.u32 %s165, 1
        %s414 = smul.addr %s413, 128
        %s415 = scalar_lea.vmem [#allocation5], %s414
        %p416 = pneg %p178
        %p417 = pneg %p175
        %s418 = sand.u32 %s27, 1
        %s419 = scalar_lea.sflag [#allocation6], %s418
        %s420 = sand.u32 %s191, 1
        %s421 = smul.addr %s420, 8
        %s422 = scalar_lea.vmem [#allocation7], %s421
        %p423 = pneg %p204
        %p424 = pneg %p201
        %p425 = pneg %p230
        %p426 = pneg %p227
        %s427 = sand.u32 %s217, 1
        %s428 = scalar_lea.sflag [#allocation4], %s427
        %s429 = sand.u32 %s217, 1
        %s430 = smul.addr %s429, 4
        %s431 = scalar_lea.vmem [#allocation8], %s430
        %p432 = scmp.lt.s32.totalorder %s27, 2
        %s433 = scalar_select %p432, %s27, 2
        %s434 = smul.addr %s433, 2
        %s435 = smul.addr %s434, 8
        %s436 = scalar_lea.vmem %s0, %s435
        %p437 = scmp.lt.s32.totalorder %s27, 2
        %s438 = scalar_select %p437, %s27, 2
        %s439 = smul.addr %s438, 3
        %s440 = smul.addr %s439, 8
        %s441 = scalar_lea.vmem %s1, %s440
        %p442 = scmp.lt.s32.totalorder %s27, 2
        %s443 = scalar_select %p442, %s27, 2
        %s444 = smul.addr %s443, 3
        %s445 = smul.addr %s444, 8
        %s446 = scalar_lea.vmem %s2, %s445
        %p447 = scmp.lt.s32.totalorder %s27, 2
        %s448 = scalar_select %p447, %s27, 2
        %s449 = smul.addr %s448, 4
        %s450 = scalar_lea.vmem %s4, %s449
        %v451 = vld [vmem:[%s436] sm:$0xff]
        %v452 = vld [vmem:[%s436 + $0x8] sm:$0xff]
        %v453 = vld [vmem:[%s441] sm:$0xff]
        %v454 = vld [vmem:[%s441 + $0x8] sm:$0xff]
        %v455 = vld [vmem:[%s441 + $0x10] sm:$0xff]
        %v456 = vld [vmem:[%s446] sm:$0xff]
        %v457 = vld [vmem:[%s446 + $0x8] sm:$0xff]
        %v458 = vld [vmem:[%s446 + $0x10] sm:$0xff]
        %v459 = vld [vmem:[%s354] sm:$0xff]
        %v460 = vld [vmem:[%s354 + $0x8] sm:$0xff]
        %vm461 = vcmask 130048
        %v463 = vsel %vm461, %v456, 0
        %v466 = vsel %vm461, %v457, 0
        %v469 = vsel %vm461, %v458, 0
        %471 = vmatprep.subr.mxu0 0.0
        %472 = vmatpush1.msra.mxu0 %v451
        %473 = vmatprep.subr.mxu0 0.0
        %474 = vmatpush1.msra.mxu0 %v452
        %475 = vmatprep.subr.mxu0 0.0
        %476 = vmatpush1.msra.mxu0 0.0
        %477 = vmatprep.subr.mxu0 0.0
        %478 = vmatpush1.msra.mxu0 0.0
        %479 = vmatprep.subr.mxu0 0.0
        %480 = vmatpush1.msra.mxu0 0.0
        %481 = vmatprep.subr.mxu0 0.0
        %482 = vmatpush1.msra.mxu0 0.0
        %483 = vmatprep.subr.mxu0 0.0
        %484 = vmatpush1.msra.mxu0 0.0
        %485 = vmatprep.subr.mxu0 0.0
        %486 = vmatpush1.msra.mxu0 0.0
        %487 = vmatprep.subr.mxu0 0.0
        %488 = vmatpush1.msra.mxu0 0.0
        %489 = vmatprep.subr.mxu0 0.0
        %490 = vmatpush1.msra.mxu0 0.0
        %491 = vmatprep.subr.mxu0 0.0
        %492 = vmatpush1.msra.mxu0 0.0
        %493 = vmatprep.subr.mxu0 0.0
        %494 = vmatpush1.msra.mxu0 0.0
        %495 = vmatprep.subr.mxu0 0.0
        %496 = vmatpush1.msra.mxu0 0.0
        %497 = vmatprep.subr.mxu0 0.0
        %498 = vmatpush1.msra.mxu0 0.0
        %499 = vmatprep.subr.mxu0 0.0
        %500 = vmatpush1.msra.mxu0 0.0
        %501 = vmatprep.subr.mxu0 0.0
        %502 = vmatpush1.msra.mxu0 0.0
        %503 = vmatprep.subr.mxu0 0.0
        %504 = vmatpush1.msra.mxu0 0.0
        %505 = vmatprep.subr.mxu0 0.0
        %506 = vmatpush1.msra.mxu0 0.0
        %507 = vmatprep.subr.mxu0 0.0
        %508 = vmatpush1.msra.mxu0 0.0
        %509 = vmatprep.subr.mxu0 0.0
        %510 = vmatpush1.msra.mxu0 0.0
        %511 = vmatprep.subr.mxu0 0.0
        %512 = vmatpush1.msra.mxu0 0.0
        %513 = vmatprep.subr.mxu0 0.0
        %514 = vmatpush1.msra.mxu0 0.0
        %515 = vmatprep.subr.mxu0 0.0
        %516 = vmatpush1.msra.mxu0 0.0
        %517 = vmatprep.subr.mxu0 0.0
        %518 = vmatpush1.msra.mxu0 0.0
        %519 = vmatprep.subr.mxu0 0.0
        %520 = vmatpush1.msra.mxu0 0.0
        %521 = vmatprep.subr.mxu0 0.0
        %522 = vmatpush1.msra.mxu0 0.0
        %523 = vmatprep.subr.mxu0 0.0
        %524 = vmatpush1.msra.mxu0 0.0
        %525 = vmatprep.subr.mxu0 0.0
        %526 = vmatpush1.msra.mxu0 0.0
        %527 = vmatprep.subr.mxu0 0.0
        %528 = vmatpush1.msra.mxu0 0.0
        %529 = vmatprep.subr.mxu0 0.0
        %530 = vmatpush1.msra.mxu0 0.0
        %531 = vmatprep.subr.mxu0 0.0
        %532 = vmatpush1.msra.mxu0 0.0
        %533 = vmatprep.subr.mxu0 0.0
        %534 = vmatpush1.msra.mxu0 0.0
        %535 = vmatprep.mubr.f32.mxu0 0.0
        %536 = vmatmul.mubr.f32.gmra.mrb[0].mxu0 %v463
        %v537 = vpop.f32.mrb[0].mxu0
        %v538 = vadd.f32 %v453, %v537
        %v539 = vpop.f32.mrb[0].mxu0
        %540 = vmatprep.mubr.f32.mxu0 0.0
        %541 = vmatmul.mubr.f32.gmra.mrb[0].mxu0 %v466
        %v542 = vpop.f32.mrb[0].mxu0
        %v543 = vadd.f32 %v454, %v542
        %v544 = vpop.f32.mrb[0].mxu0
        %545 = vmatprep.mubr.f32.mxu0 0.0
        %546 = vmatmul.mubr.f32.gmra.mrb[0].mxu0 %v469
        %v547 = vpop.f32.mrb[0].mxu0
        %v548 = vadd.f32 %v455, %v547
        %v549 = vpop.f32.mrb[0].mxu0
        %550 = vdwg.mxu0
        %v551 = vmax.f32 %v538, 0.0
        %v552 = vmax.f32 %v543, 0.0
        %v553 = vmax.f32 %v548, 0.0
        %vm554 = vcmask 195584
        %v556 = vsel %vm554, %v459, 0
        %v559 = vsel %vm554, %v460, 0
        %561 = vmatprep.subr.mxu0 0.0
        %562 = vmatpush1.msra.mxu0 %v551
        %563 = vmatprep.subr.mxu0 0.0
        %564 = vmatpush1.msra.mxu0 %v552
        %565 = vmatprep.subr.mxu0 0.0
        %566 = vmatpush1.msra.mxu0 %v553
        %567 = vmatprep.subr.mxu0 0.0
        %568 = vmatpush1.msra.mxu0 0.0
        %569 = vmatprep.subr.mxu0 0.0
        %570 = vmatpush1.msra.mxu0 0.0
        %571 = vmatprep.subr.mxu0 0.0
        %572 = vmatpush1.msra.mxu0 0.0
        %573 = vmatprep.subr.mxu0 0.0
        %574 = vmatpush1.msra.mxu0 0.0
        %575 = vmatprep.subr.mxu0 0.0
        %576 = vmatpush1.msra.mxu0 0.0
        %577 = vmatprep.subr.mxu0 0.0
        %578 = vmatpush1.msra.mxu0 0.0
        %579 = vmatprep.subr.mxu0 0.0
        %580 = vmatpush1.msra.mxu0 0.0
        %581 = vmatprep.subr.mxu0 0.0
        %582 = vmatpush1.msra.mxu0 0.0
        %583 = vmatprep.subr.mxu0 0.0
        %584 = vmatpush1.msra.mxu0 0.0
        %585 = vmatprep.subr.mxu0 0.0
        %586 = vmatpush1.msra.mxu0 0.0
        %587 = vmatprep.subr.mxu0 0.0
        %588 = vmatpush1.msra.mxu0 0.0
        %589 = vmatprep.subr.mxu0 0.0
        %590 = vmatpush1.msra.mxu0 0.0
        %591 = vmatprep.subr.mxu0 0.0
        %592 = vmatpush1.msra.mxu0 0.0
        %593 = vmatprep.subr.mxu0 0.0
        %594 = vmatpush1.msra.mxu0 0.0
        %595 = vmatprep.subr.mxu0 0.0
        %596 = vmatpush1.msra.mxu0 0.0
        %597 = vmatprep.subr.mxu0 0.0
        %598 = vmatpush1.msra.mxu0 0.0
        %599 = vmatprep.subr.mxu0 0.0
        %600 = vmatpush1.msra.mxu0 0.0
        %601 = vmatprep.subr.mxu0 0.0
        %602 = vmatpush1.msra.mxu0 0.0
        %603 = vmatprep.subr.mxu0 0.0
        %604 = vmatpush1.msra.mxu0 0.0
        %605 = vmatprep.subr.mxu0 0.0
        %606 = vmatpush1.msra.mxu0 0.0
        %607 = vmatprep.subr.mxu0 0.0
        %608 = vmatpush1.msra.mxu0 0.0
        %609 = vmatprep.subr.mxu0 0.0
        %610 = vmatpush1.msra.mxu0 0.0
        %611 = vmatprep.subr.mxu0 0.0
        %612 = vmatpush1.msra.mxu0 0.0
        %613 = vmatprep.subr.mxu0 0.0
        %614 = vmatpush1.msra.mxu0 0.0
        %615 = vmatprep.subr.mxu0 0.0
        %616 = vmatpush1.msra.mxu0 0.0
        %617 = vmatprep.subr.mxu0 0.0
        %618 = vmatpush1.msra.mxu0 0.0
        %619 = vmatprep.subr.mxu0 0.0
        %620 = vmatpush1.msra.mxu0 0.0
        %621 = vmatprep.subr.mxu0 0.0
        %622 = vmatpush1.msra.mxu0 0.0
        %623 = vmatprep.subr.mxu0 0.0
        %624 = vmatpush1.msra.mxu0 0.0
        %625 = vmatprep.mubr.f32.mxu0 0.0
        %626 = vmatmul.mubr.f32.gmra.mrb[0].mxu0 %v556
        %v627 = vpop.f32.mrb[0].mxu0
        %v628 = vadd.f32 0.0, %v627
        %v629 = vpop.f32.mrb[0].mxu0
        %630 = vmatprep.mubr.f32.mxu0 0.0
        %631 = vmatmul.mubr.f32.gmra.mrb[0].mxu0 %v559
        %v632 = vpop.f32.mrb[0].mxu0
        %v633 = vadd.f32 0.0, %v632
        %v634 = vpop.f32.mrb[0].mxu0
        %635 = vdwg.mxu0
        %v636 = vadd.f32 %v451, %v628
        %v637 = vadd.f32 %v452, %v633
        %v638 = vld [vmem:[%s372] sm:$0xf]
        %v639 = vld [vmem:[%s363] sm:$0xff]
        %v640 = vld [vmem:[%s363 + $0x8] sm:$0xff]
        %v641 = vld [vmem:[%s363 + $0x10] sm:$0xff]
        %v642 = vld [vmem:[%s363 + $0x18] sm:$0xff]
        %v643 = vlaneseq
        %v644 = vshrl.u32 %v643, 7
        %v645 = vsub.s32 0, %v644
        %v646 = vrot.slane %v638, %v645
        %vm647 = vcmask 261120
        %v649 = vsel %vm647, %v636, 0
        %v652 = vsel %vm647, %v637, 0
        %654 = vmatprep.subr.mxu0 0.0
        %655 = vmatpush1.msra.mxu0 %v639
        %656 = vmatprep.subr.mxu0 0.0
        %657 = vmatpush1.msra.mxu0 %v640
        %658 = vmatprep.subr.mxu0 0.0
        %659 = vmatpush1.msra.mxu0 %v641
        %660 = vmatprep.subr.mxu0 0.0
        %661 = vmatpush1.msra.mxu0 %v642
        %662 = vmatprep.subr.mxu0 0.0
        %663 = vmatpush1.msra.mxu0 0.0
        %664 = vmatprep.subr.mxu0 0.0
        %665 = vmatpush1.msra.mxu0 0.0
        %666 = vmatprep.subr.mxu0 0.0
        %667 = vmatpush1.msra.mxu0 0.0
        %668 = vmatprep.subr.mxu0 0.0
        %669 = vmatpush1.msra.mxu0 0.0
        %670 = vmatprep.subr.mxu0 0.0
        %671 = vmatpush1.msra.mxu0 0.0
        %672 = vmatprep.subr.mxu0 0.0
        %673 = vmatpush1.msra.mxu0 0.0
        %674 = vmatprep.subr.mxu0 0.0
        %675 = vmatpush1.msra.mxu0 0.0
        %676 = vmatprep.subr.mxu0 0.0
        %677 = vmatpush1.msra.mxu0 0.0
        %678 = vmatprep.subr.mxu0 0.0
        %679 = vmatpush1.msra.mxu0 0.0
        %680 = vmatprep.subr.mxu0 0.0
        %681 = vmatpush1.msra.mxu0 0.0
        %682 = vmatprep.subr.mxu0 0.0
        %683 = vmatpush1.msra.mxu0 0.0
        %684 = vmatprep.subr.mxu0 0.0
        %685 = vmatpush1.msra.mxu0 0.0
        %686 = vmatprep.subr.mxu0 0.0
        %687 = vmatpush1.msra.mxu0 0.0
        %688 = vmatprep.subr.mxu0 0.0
        %689 = vmatpush1.msra.mxu0 0.0
        %690 = vmatprep.subr.mxu0 0.0
        %691 = vmatpush1.msra.mxu0 0.0
        %692 = vmatprep.subr.mxu0 0.0
        %693 = vmatpush1.msra.mxu0 0.0
        %694 = vmatprep.subr.mxu0 0.0
        %695 = vmatpush1.msra.mxu0 0.0
        %696 = vmatprep.subr.mxu0 0.0
        %697 = vmatpush1.msra.mxu0 0.0
        %698 = vmatprep.subr.mxu0 0.0
        %699 = vmatpush1.msra.mxu0 0.0
        %700 = vmatprep.subr.mxu0 0.0
        %701 = vmatpush1.msra.mxu0 0.0
        %702 = vmatprep.subr.mxu0 0.0
        %703 = vmatpush1.msra.mxu0 0.0
        %704 = vmatprep.subr.mxu0 0.0
        %705 = vmatpush1.msra.mxu0 0.0
        %706 = vmatprep.subr.mxu0 0.0
        %707 = vmatpush1.msra.mxu0 0.0
        %708 = vmatprep.subr.mxu0 0.0
        %709 = vmatpush1.msra.mxu0 0.0
        %710 = vmatprep.subr.mxu0 0.0
        %711 = vmatpush1.msra.mxu0 0.0
        %712 = vmatprep.subr.mxu0 0.0
        %713 = vmatpush1.msra.mxu0 0.0
        %714 = vmatprep.subr.mxu0 0.0
        %715 = vmatpush1.msra.mxu0 0.0
        %716 = vmatprep.subr.mxu0 0.0
        %717 = vmatpush1.msra.mxu0 0.0
        %718 = vmatprep.mubr.f32.mxu0 0.0
        %719 = vmatmul.mubr.f32.gmra.mrb[0].mxu0 %v649
        %v720 = vpop.f32.mrb[0].mxu0
        %v721 = vadd.f32 %v646, %v720
        %v722 = vpop.f32.mrb[0].mxu0
        %723 = vmatprep.mubr.f32.mxu0 0.0
        %724 = vmatmul.mubr.f32.gmra.mrb[0].mxu0 %v652
        %v725 = vpop.f32.mrb[0].mxu0
        %v726 = vadd.f32 %v646, %v725
        %v727 = vpop.f32.mrb[0].mxu0
        %728 = vdwg.mxu0
        %v729 = vmax.f32 %v721, 0.0
        %v730 = vmax.f32 %v726, 0.0
        %s731 = scalar_lea.vmem %s363, 32 [#allocation5]
        %v732 = vld [vmem:[%s731] sm:$0xff]
        %v733 = vld [vmem:[%s731 + $0x8] sm:$0xff]
        %v734 = vld [vmem:[%s731 + $0x10] sm:$0xff]
        %v735 = vld [vmem:[%s731 + $0x18] sm:$0xff]
        %v736 = vlaneseq
        %v737 = vshrl.u32 %v736, 7
        %v738 = vsub.s32 1, %v737
        %v739 = vrot.slane %v638, %v738
        %v741 = vsel %vm647, %v729, 0
        %v744 = vsel %vm647, %v730, 0
        %746 = vmatprep.subr.mxu0 0.0
        %747 = vmatpush1.msra.mxu0 %v732
        %748 = vmatprep.subr.mxu0 0.0
        %749 = vmatpush1.msra.mxu0 %v733
        %750 = vmatprep.subr.mxu0 0.0
        %751 = vmatpush1.msra.mxu0 %v734
        %752 = vmatprep.subr.mxu0 0.0
        %753 = vmatpush1.msra.mxu0 %v735
        %754 = vmatprep.subr.mxu0 0.0
        %755 = vmatpush1.msra.mxu0 0.0
        %756 = vmatprep.subr.mxu0 0.0
        %757 = vmatpush1.msra.mxu0 0.0
        %758 = vmatprep.subr.mxu0 0.0
        %759 = vmatpush1.msra.mxu0 0.0
        %760 = vmatprep.subr.mxu0 0.0
        %761 = vmatpush1.msra.mxu0 0.0
        %762 = vmatprep.subr.mxu0 0.0
        %763 = vmatpush1.msra.mxu0 0.0
        %764 = vmatprep.subr.mxu0 0.0
        %765 = vmatpush1.msra.mxu0 0.0
        %766 = vmatprep.subr.mxu0 0.0
        %767 = vmatpush1.msra.mxu0 0.0
        %768 = vmatprep.subr.mxu0 0.0
        %769 = vmatpush1.msra.mxu0 0.0
        %770 = vmatprep.subr.mxu0 0.0
        %771 = vmatpush1.msra.mxu0 0.0
        %772 = vmatprep.subr.mxu0 0.0
        %773 = vmatpush1.msra.mxu0 0.0
        %774 = vmatprep.subr.mxu0 0.0
        %775 = vmatpush1.msra.mxu0 0.0
        %776 = vmatprep.subr.mxu0 0.0
        %777 = vmatpush1.msra.mxu0 0.0
        %778 = vmatprep.subr.mxu0 0.0
        %779 = vmatpush1.msra.mxu0 0.0
        %780 = vmatprep.subr.mxu0 0.0
        %781 = vmatpush1.msra.mxu0 0.0
        %782 = vmatprep.subr.mxu0 0.0
        %783 = vmatpush1.msra.mxu0 0.0
        %784 = vmatprep.subr.mxu0 0.0
        %785 = vmatpush1.msra.mxu0 0.0
        %786 = vmatprep.subr.mxu0 0.0
        %787 = vmatpush1.msra.mxu0 0.0
        %788 = vmatprep.subr.mxu0 0.0
        %789 = vmatpush1.msra.mxu0 0.0
        %790 = vmatprep.subr.mxu0 0.0
        %791 = vmatpush1.msra.mxu0 0.0
        %792 = vmatprep.subr.mxu0 0.0
        %793 = vmatpush1.msra.mxu0 0.0
        %794 = vmatprep.subr.mxu0 0.0
        %795 = vmatpush1.msra.mxu0 0.0
        %796 = vmatprep.subr.mxu0 0.0
        %797 = vmatpush1.msra.mxu0 0.0
        %798 = vmatprep.subr.mxu0 0.0
        %799 = vmatpush1.msra.mxu0 0.0
        %800 = vmatprep.subr.mxu0 0.0
        %801 = vmatpush1.msra.mxu0 0.0
        %802 = vmatprep.subr.mxu0 0.0
        %803 = vmatpush1.msra.mxu0 0.0
        %804 = vmatprep.subr.mxu0 0.0
        %805 = vmatpush1.msra.mxu0 0.0
        %806 = vmatprep.subr.mxu0 0.0
        %807 = vmatpush1.msra.mxu0 0.0
        %808 = vmatprep.subr.mxu0 0.0
        %809 = vmatpush1.msra.mxu0 0.0
        %810 = vmatprep.mubr.f32.mxu0 0.0
        %811 = vmatmul.mubr.f32.gmra.mrb[0].mxu0 %v741
        %v812 = vpop.f32.mrb[0].mxu0
        %v813 = vadd.f32 %v739, %v812
        %v814 = vpop.f32.mrb[0].mxu0
        %815 = vmatprep.mubr.f32.mxu0 0.0
        %816 = vmatmul.mubr.f32.gmra.mrb[0].mxu0 %v744
        %v817 = vpop.f32.mrb[0].mxu0
        %v818 = vadd.f32 %v739, %v817
        %v819 = vpop.f32.mrb[0].mxu0
        %820 = vdwg.mxu0
        %v821 = vlaneseq
        %v822 = vshrl.u32 %v821, 7
        %v823 = vsub.s32 2, %v822
        %v824 = vrot.slane %v638, %v823
        %v825 = vmul.f32 %v813, %v824
        %v826 = vmul.f32 %v818, %v824
        %v827 = vlaneseq
        %v828 = vshrl.u32 %v827, 7
        %v829 = vsub.s32 3, %v828
        %v830 = vrot.slane %v638, %v829
        %v831 = vadd.f32 %v825, %v830
        %v832 = vadd.f32 %v826, %v830
        %v833 = vmax.f32 %v831, 0.0
        %v834 = vmax.f32 %v832, 0.0
        %835 = vmatprep.subr.mxu0 0.0
        %836 = vmatpush1.msra.mxu0 %v833
        %837 = vmatprep.subr.mxu0 0.0
        %838 = vmatpush1.msra.mxu0 %v834
        %839 = vmatprep.subr.mxu0 0.0
        %840 = vmatpush1.msra.mxu0 0.0
        %841 = vmatprep.subr.mxu0 0.0
        %842 = vmatpush1.msra.mxu0 0.0
        %843 = vmatprep.subr.mxu0 0.0
        %844 = vmatpush1.msra.mxu0 0.0
        %845 = vmatprep.subr.mxu0 0.0
        %846 = vmatpush1.msra.mxu0 0.0
        %847 = vmatprep.subr.mxu0 0.0
        %848 = vmatpush1.msra.mxu0 0.0
        %849 = vmatprep.subr.mxu0 0.0
        %850 = vmatpush1.msra.mxu0 0.0
        %851 = vmatprep.subr.mxu0 0.0
        %852 = vmatpush1.msra.mxu0 0.0
        %853 = vmatprep.subr.mxu0 0.0
        %854 = vmatpush1.msra.mxu0 0.0
        %855 = vmatprep.subr.mxu0 0.0
        %856 = vmatpush1.msra.mxu0 0.0
        %857 = vmatprep.subr.mxu0 0.0
        %858 = vmatpush1.msra.mxu0 0.0
        %859 = vmatprep.subr.mxu0 0.0
        %860 = vmatpush1.msra.mxu0 0.0
        %861 = vmatprep.subr.mxu0 0.0
        %862 = vmatpush1.msra.mxu0 0.0
        %863 = vmatprep.subr.mxu0 0.0
        %864 = vmatpush1.msra.mxu0 0.0
        %865 = vmatprep.subr.mxu0 0.0
        %866 = vmatpush1.msra.mxu0 0.0
        %867 = vmatprep.subr.mxu0 0.0
        %868 = vmatpush1.msra.mxu0 0.0
        %869 = vmatprep.subr.mxu0 0.0
        %870 = vmatpush1.msra.mxu0 0.0
        %871 = vmatprep.subr.mxu0 0.0
        %872 = vmatpush1.msra.mxu0 0.0
        %873 = vmatprep.subr.mxu0 0.0
        %874 = vmatpush1.msra.mxu0 0.0
        %875 = vmatprep.subr.mxu0 0.0
        %876 = vmatpush1.msra.mxu0 0.0
        %877 = vmatprep.subr.mxu0 0.0
        %878 = vmatpush1.msra.mxu0 0.0
        %879 = vmatprep.subr.mxu0 0.0
        %880 = vmatpush1.msra.mxu0 0.0
        %881 = vmatprep.subr.mxu0 0.0
        %882 = vmatpush1.msra.mxu0 0.0
        %883 = vmatprep.subr.mxu0 0.0
        %884 = vmatpush1.msra.mxu0 0.0
        %885 = vmatprep.subr.mxu0 0.0
        %886 = vmatpush1.msra.mxu0 0.0
        %887 = vmatprep.subr.mxu0 0.0
        %888 = vmatpush1.msra.mxu0 0.0
        %889 = vmatprep.subr.mxu0 0.0
        %890 = vmatpush1.msra.mxu0 0.0
        %891 = vmatprep.subr.mxu0 0.0
        %892 = vmatpush1.msra.mxu0 0.0
        %893 = vmatprep.subr.mxu0 0.0
        %894 = vmatpush1.msra.mxu0 0.0
        %895 = vmatprep.subr.mxu0 0.0
        %896 = vmatpush1.msra.mxu0 0.0
        %897 = vmatprep.subr.mxu0 0.0
        %898 = vmatpush1.msra.mxu0 0.0
        %899 = vmatprep.mubr.f32.mxu0 0.0
        %900 = vmatmul.mubr.f32.gmra.mrb[0].mxu0 %v463
        %v901 = vpop.f32.mrb[0].mxu0
        %v902 = vadd.f32 %v453, %v901
        %v903 = vpop.f32.mrb[0].mxu0
        %904 = vmatprep.mubr.f32.mxu0 0.0
        %905 = vmatmul.mubr.f32.gmra.mrb[0].mxu0 %v466
        %v906 = vpop.f32.mrb[0].mxu0
        %v907 = vadd.f32 %v454, %v906
        %v908 = vpop.f32.mrb[0].mxu0
        %909 = vmatprep.mubr.f32.mxu0 0.0
        %910 = vmatmul.mubr.f32.gmra.mrb[0].mxu0 %v469
        %v911 = vpop.f32.mrb[0].mxu0
        %v912 = vadd.f32 %v455, %v911
        %v913 = vpop.f32.mrb[0].mxu0
        %914 = vdwg.mxu0
        %v915 = vmax.f32 %v902, 0.0
        %v916 = vmax.f32 %v907, 0.0
        %v917 = vmax.f32 %v912, 0.0
        %918 = vmatprep.subr.mxu0 0.0
        %919 = vmatpush1.msra.mxu0 %v915
        %920 = vmatprep.subr.mxu0 0.0
        %921 = vmatpush1.msra.mxu0 %v916
        %922 = vmatprep.subr.mxu0 0.0
        %923 = vmatpush1.msra.mxu0 %v917
        %924 = vmatprep.subr.mxu0 0.0
        %925 = vmatpush1.msra.mxu0 0.0
        %926 = vmatprep.subr.mxu0 0.0
        %927 = vmatpush1.msra.mxu0 0.0
        %928 = vmatprep.subr.mxu0 0.0
        %929 = vmatpush1.msra.mxu0 0.0
        %930 = vmatprep.subr.mxu0 0.0
        %931 = vmatpush1.msra.mxu0 0.0
        %932 = vmatprep.subr.mxu0 0.0
        %933 = vmatpush1.msra.mxu0 0.0
        %934 = vmatprep.subr.mxu0 0.0
        %935 = vmatpush1.msra.mxu0 0.0
        %936 = vmatprep.subr.mxu0 0.0
        %937 = vmatpush1.msra.mxu0 0.0
        %938 = vmatprep.subr.mxu0 0.0
        %939 = vmatpush1.msra.mxu0 0.0
        %940 = vmatprep.subr.mxu0 0.0
        %941 = vmatpush1.msra.mxu0 0.0
        %942 = vmatprep.subr.mxu0 0.0
        %943 = vmatpush1.msra.mxu0 0.0
        %944 = vmatprep.subr.mxu0 0.0
        %945 = vmatpush1.msra.mxu0 0.0
        %946 = vmatprep.subr.mxu0 0.0
        %947 = vmatpush1.msra.mxu0 0.0
        %948 = vmatprep.subr.mxu0 0.0
        %949 = vmatpush1.msra.mxu0 0.0
        %950 = vmatprep.subr.mxu0 0.0
        %951 = vmatpush1.msra.mxu0 0.0
        %952 = vmatprep.subr.mxu0 0.0
        %953 = vmatpush1.msra.mxu0 0.0
        %954 = vmatprep.subr.mxu0 0.0
        %955 = vmatpush1.msra.mxu0 0.0
        %956 = vmatprep.subr.mxu0 0.0
        %957 = vmatpush1.msra.mxu0 0.0
        %958 = vmatprep.subr.mxu0 0.0
        %959 = vmatpush1.msra.mxu0 0.0
        %960 = vmatprep.subr.mxu0 0.0
        %961 = vmatpush1.msra.mxu0 0.0
        %962 = vmatprep.subr.mxu0 0.0
        %963 = vmatpush1.msra.mxu0 0.0
        %964 = vmatprep.subr.mxu0 0.0
        %965 = vmatpush1.msra.mxu0 0.0
        %966 = vmatprep.subr.mxu0 0.0
        %967 = vmatpush1.msra.mxu0 0.0
        %968 = vmatprep.subr.mxu0 0.0
        %969 = vmatpush1.msra.mxu0 0.0
        %970 = vmatprep.subr.mxu0 0.0
        %971 = vmatpush1.msra.mxu0 0.0
        %972 = vmatprep.subr.mxu0 0.0
        %973 = vmatpush1.msra.mxu0 0.0
        %974 = vmatprep.subr.mxu0 0.0
        %975 = vmatpush1.msra.mxu0 0.0
        %976 = vmatprep.subr.mxu0 0.0
        %977 = vmatpush1.msra.mxu0 0.0
        %978 = vmatprep.subr.mxu0 0.0
        %979 = vmatpush1.msra.mxu0 0.0
        %980 = vmatprep.subr.mxu0 0.0
        %981 = vmatpush1.msra.mxu0 0.0
        %982 = vmatprep.mubr.f32.mxu0 0.0
        %983 = vmatmul.mubr.f32.gmra.mrb[0].mxu0 %v556
        %v984 = vpop.f32.mrb[0].mxu0
        %v985 = vadd.f32 0.0, %v984
        %v986 = vpop.f32.mrb[0].mxu0
        %987 = vmatprep.mubr.f32.mxu0 0.0
        %988 = vmatmul.mubr.f32.gmra.mrb[0].mxu0 %v559
        %v989 = vpop.f32.mrb[0].mxu0
        %v990 = vadd.f32 0.0, %v989
        %v991 = vpop.f32.mrb[0].mxu0
        %992 = vdwg.mxu0
        %v993 = vadd.f32 %v833, %v985
        %v994 = vadd.f32 %v834, %v990
        %s995 = scalar_lea.vmem %s372, 4 [#allocation7]
        %v996 = vld [vmem:[%s995] sm:$0xf]
        %s997 = scalar_lea.vmem %s363, 64 [#allocation5]
        %v998 = vld [vmem:[%s997] sm:$0xff]
        %v999 = vld [vmem:[%s997 + $0x8] sm:$0xff]
        %v1000 = vld [vmem:[%s997 + $0x10] sm:$0xff]
        %v1001 = vld [vmem:[%s997 + $0x18] sm:$0xff]
        %v1002 = vlaneseq
        %v1003 = vshrl.u32 %v1002, 7
        %v1004 = vsub.s32 0, %v1003
        %v1005 = vrot.slane %v996, %v1004
        %v1007 = vsel %vm647, %v993, 0
        %v1010 = vsel %vm647, %v994, 0
        %1012 = vmatprep.subr.mxu0 0.0
        %1013 = vmatpush1.msra.mxu0 %v998
        %1014 = vmatprep.subr.mxu0 0.0
        %1015 = vmatpush1.msra.mxu0 %v999
        %1016 = vmatprep.subr.mxu0 0.0
        %1017 = vmatpush1.msra.mxu0 %v1000
        %1018 = vmatprep.subr.mxu0 0.0
        %1019 = vmatpush1.msra.mxu0 %v1001
        %1020 = vmatprep.subr.mxu0 0.0
        %1021 = vmatpush1.msra.mxu0 0.0
        %1022 = vmatprep.subr.mxu0 0.0
        %1023 = vmatpush1.msra.mxu0 0.0
        %1024 = vmatprep.subr.mxu0 0.0
        %1025 = vmatpush1.msra.mxu0 0.0
        %1026 = vmatprep.subr.mxu0 0.0
        %1027 = vmatpush1.msra.mxu0 0.0
        %1028 = vmatprep.subr.mxu0 0.0
        %1029 = vmatpush1.msra.mxu0 0.0
        %1030 = vmatprep.subr.mxu0 0.0
        %1031 = vmatpush1.msra.mxu0 0.0
        %1032 = vmatprep.subr.mxu0 0.0
        %1033 = vmatpush1.msra.mxu0 0.0
        %1034 = vmatprep.subr.mxu0 0.0
        %1035 = vmatpush1.msra.mxu0 0.0
        %1036 = vmatprep.subr.mxu0 0.0
        %1037 = vmatpush1.msra.mxu0 0.0
        %1038 = vmatprep.subr.mxu0 0.0
        %1039 = vmatpush1.msra.mxu0 0.0
        %1040 = vmatprep.subr.mxu0 0.0
        %1041 = vmatpush1.msra.mxu0 0.0
        %1042 = vmatprep.subr.mxu0 0.0
        %1043 = vmatpush1.msra.mxu0 0.0
        %1044 = vmatprep.subr.mxu0 0.0
        %1045 = vmatpush1.msra.mxu0 0.0
        %1046 = vmatprep.subr.mxu0 0.0
        %1047 = vmatpush1.msra.mxu0 0.0
        %1048 = vmatprep.subr.mxu0 0.0
        %1049 = vmatpush1.msra.mxu0 0.0
        %1050 = vmatprep.subr.mxu0 0.0
        %1051 = vmatpush1.msra.mxu0 0.0
        %1052 = vmatprep.subr.mxu0 0.0
        %1053 = vmatpush1.msra.mxu0 0.0
        %1054 = vmatprep.subr.mxu0 0.0
        %1055 = vmatpush1.msra.mxu0 0.0
        %1056 = vmatprep.subr.mxu0 0.0
        %1057 = vmatpush1.msra.mxu0 0.0
        %1058 = vmatprep.subr.mxu0 0.0
        %1059 = vmatpush1.msra.mxu0 0.0
        %1060 = vmatprep.subr.mxu0 0.0
        %1061 = vmatpush1.msra.mxu0 0.0
        %1062 = vmatprep.subr.mxu0 0.0
        %1063 = vmatpush1.msra.mxu0 0.0
        %1064 = vmatprep.subr.mxu0 0.0
        %1065 = vmatpush1.msra.mxu0 0.0
        %1066 = vmatprep.subr.mxu0 0.0
        %1067 = vmatpush1.msra.mxu0 0.0
        %1068 = vmatprep.subr.mxu0 0.0
        %1069 = vmatpush1.msra.mxu0 0.0
        %1070 = vmatprep.subr.mxu0 0.0
        %1071 = vmatpush1.msra.mxu0 0.0
        %1072 = vmatprep.subr.mxu0 0.0
        %1073 = vmatpush1.msra.mxu0 0.0
        %1074 = vmatprep.subr.mxu0 0.0
        %1075 = vmatpush1.msra.mxu0 0.0
        %1076 = vmatprep.mubr.f32.mxu0 0.0
        %1077 = vmatmul.mubr.f32.gmra.mrb[0].mxu0 %v1007
        %v1078 = vpop.f32.mrb[0].mxu0
        %v1079 = vadd.f32 %v1005, %v1078
        %v1080 = vpop.f32.mrb[0].mxu0
        %1081 = vmatprep.mubr.f32.mxu0 0.0
        %1082 = vmatmul.mubr.f32.gmra.mrb[0].mxu0 %v1010
        %v1083 = vpop.f32.mrb[0].mxu0
        %v1084 = vadd.f32 %v1005, %v1083
        %v1085 = vpop.f32.mrb[0].mxu0
        %1086 = vdwg.mxu0
        %v1087 = vmax.f32 %v1079, 0.0
        %v1088 = vmax.f32 %v1084, 0.0
        %s1089 = scalar_lea.vmem %s363, 96 [#allocation5]
        %v1090 = vld [vmem:[%s1089] sm:$0xff]
        %v1091 = vld [vmem:[%s1089 + $0x8] sm:$0xff]
        %v1092 = vld [vmem:[%s1089 + $0x10] sm:$0xff]
        %v1093 = vld [vmem:[%s1089 + $0x18] sm:$0xff]
        %v1094 = vlaneseq
        %v1095 = vshrl.u32 %v1094, 7
        %v1096 = vsub.s32 1, %v1095
        %v1097 = vrot.slane %v996, %v1096
        %v1099 = vsel %vm647, %v1087, 0
        %v1102 = vsel %vm647, %v1088, 0
        %1104 = vmatprep.subr.mxu0 0.0
        %1105 = vmatpush1.msra.mxu0 %v1090
        %1106 = vmatprep.subr.mxu0 0.0
        %1107 = vmatpush1.msra.mxu0 %v1091
        %1108 = vmatprep.subr.mxu0 0.0
        %1109 = vmatpush1.msra.mxu0 %v1092
        %1110 = vmatprep.subr.mxu0 0.0
        %1111 = vmatpush1.msra.mxu0 %v1093
        %1112 = vmatprep.subr.mxu0 0.0
        %1113 = vmatpush1.msra.mxu0 0.0
        %1114 = vmatprep.subr.mxu0 0.0
        %1115 = vmatpush1.msra.mxu0 0.0
        %1116 = vmatprep.subr.mxu0 0.0
        %1117 = vmatpush1.msra.mxu0 0.0
        %1118 = vmatprep.subr.mxu0 0.0
        %1119 = vmatpush1.msra.mxu0 0.0
        %1120 = vmatprep.subr.mxu0 0.0
        %1121 = vmatpush1.msra.mxu0 0.0
        %1122 = vmatprep.subr.mxu0 0.0
        %1123 = vmatpush1.msra.mxu0 0.0
        %1124 = vmatprep.subr.mxu0 0.0
        %1125 = vmatpush1.msra.mxu0 0.0
        %1126 = vmatprep.subr.mxu0 0.0
        %1127 = vmatpush1.msra.mxu0 0.0
        %1128 = vmatprep.subr.mxu0 0.0
        %1129 = vmatpush1.msra.mxu0 0.0
        %1130 = vmatprep.subr.mxu0 0.0
        %1131 = vmatpush1.msra.mxu0 0.0
        %1132 = vmatprep.subr.mxu0 0.0
        %1133 = vmatpush1.msra.mxu0 0.0
        %1134 = vmatprep.subr.mxu0 0.0
        %1135 = vmatpush1.msra.mxu0 0.0
        %1136 = vmatprep.subr.mxu0 0.0
        %1137 = vmatpush1.msra.mxu0 0.0
        %1138 = vmatprep.subr.mxu0 0.0
        %1139 = vmatpush1.msra.mxu0 0.0
        %1140 = vmatprep.subr.mxu0 0.0
        %1141 = vmatpush1.msra.mxu0 0.0
        %1142 = vmatprep.subr.mxu0 0.0
        %1143 = vmatpush1.msra.mxu0 0.0
        %1144 = vmatprep.subr.mxu0 0.0
        %1145 = vmatpush1.msra.mxu0 0.0
        %1146 = vmatprep.subr.mxu0 0.0
        %1147 = vmatpush1.msra.mxu0 0.0
        %1148 = vmatprep.subr.mxu0 0.0
        %1149 = vmatpush1.msra.mxu0 0.0
        %1150 = vmatprep.subr.mxu0 0.0
        %1151 = vmatpush1.msra.mxu0 0.0
        %1152 = vmatprep.subr.mxu0 0.0
        %1153 = vmatpush1.msra.mxu0 0.0
        %1154 = vmatprep.subr.mxu0 0.0
        %1155 = vmatpush1.msra.mxu0 0.0
        %1156 = vmatprep.subr.mxu0 0.0
        %1157 = vmatpush1.msra.mxu0 0.0
        %1158 = vmatprep.subr.mxu0 0.0
        %1159 = vmatpush1.msra.mxu0 0.0
        %1160 = vmatprep.subr.mxu0 0.0
        %1161 = vmatpush1.msra.mxu0 0.0
        %1162 = vmatprep.subr.mxu0 0.0
        %1163 = vmatpush1.msra.mxu0 0.0
        %1164 = vmatprep.subr.mxu0 0.0
        %1165 = vmatpush1.msra.mxu0 0.0
        %1166 = vmatprep.subr.mxu0 0.0
        %1167 = vmatpush1.msra.mxu0 0.0
        %1168 = vmatprep.mubr.f32.mxu0 0.0
        %1169 = vmatmul.mubr.f32.gmra.mrb[0].mxu0 %v1099
        %v1170 = vpop.f32.mrb[0].mxu0
        %v1171 = vadd.f32 %v1097, %v1170
        %v1172 = vpop.f32.mrb[0].mxu0
        %1173 = vmatprep.mubr.f32.mxu0 0.0
        %1174 = vmatmul.mubr.f32.gmra.mrb[0].mxu0 %v1102
        %v1175 = vpop.f32.mrb[0].mxu0
        %v1176 = vadd.f32 %v1097, %v1175
        %v1177 = vpop.f32.mrb[0].mxu0
        %1178 = vdwg.mxu0
        %v1179 = vlaneseq
        %v1180 = vshrl.u32 %v1179, 7
        %v1181 = vsub.s32 2, %v1180
        %v1182 = vrot.slane %v996, %v1181
        %v1183 = vmul.f32 %v1171, %v1182
        %v1184 = vmul.f32 %v1176, %v1182
        %v1185 = vlaneseq
        %v1186 = vshrl.u32 %v1185, 7
        %v1187 = vsub.s32 3, %v1186
        %v1188 = vrot.slane %v996, %v1187
        %v1189 = vadd.f32 %v1183, %v1188
        %v1190 = vadd.f32 %v1184, %v1188
        %v1191 = vmax.f32 %v1189, 0.0
        %v1192 = vmax.f32 %v1190, 0.0
        %v1193 = vld [vmem:[%s450] sm:$0xf]
        %v1195 = vsel %vm461, %v1193, 0
        %1197 = vmatprep.subr.mxu0 0.0
        %1198 = vmatpush1.msra.mxu0 %v1191
        %1199 = vmatprep.subr.mxu0 0.0
        %1200 = vmatpush1.msra.mxu0 %v1192
        %1201 = vmatprep.subr.mxu0 0.0
        %1202 = vmatpush1.msra.mxu0 0.0
        %1203 = vmatprep.subr.mxu0 0.0
        %1204 = vmatpush1.msra.mxu0 0.0
        %1205 = vmatprep.subr.mxu0 0.0
        %1206 = vmatpush1.msra.mxu0 0.0
        %1207 = vmatprep.subr.mxu0 0.0
        %1208 = vmatpush1.msra.mxu0 0.0
        %1209 = vmatprep.subr.mxu0 0.0
        %1210 = vmatpush1.msra.mxu0 0.0
        %1211 = vmatprep.subr.mxu0 0.0
        %1212 = vmatpush1.msra.mxu0 0.0
        %1213 = vmatprep.subr.mxu0 0.0
        %1214 = vmatpush1.msra.mxu0 0.0
        %1215 = vmatprep.subr.mxu0 0.0
        %1216 = vmatpush1.msra.mxu0 0.0
        %1217 = vmatprep.subr.mxu0 0.0
        %1218 = vmatpush1.msra.mxu0 0.0
        %1219 = vmatprep.subr.mxu0 0.0
        %1220 = vmatpush1.msra.mxu0 0.0
        %1221 = vmatprep.subr.mxu0 0.0
        %1222 = vmatpush1.msra.mxu0 0.0
        %1223 = vmatprep.subr.mxu0 0.0
        %1224 = vmatpush1.msra.mxu0 0.0
        %1225 = vmatprep.subr.mxu0 0.0
        %1226 = vmatpush1.msra.mxu0 0.0
        %1227 = vmatprep.subr.mxu0 0.0
        %1228 = vmatpush1.msra.mxu0 0.0
        %1229 = vmatprep.subr.mxu0 0.0
        %1230 = vmatpush1.msra.mxu0 0.0
        %1231 = vmatprep.subr.mxu0 0.0
        %1232 = vmatpush1.msra.mxu0 0.0
        %1233 = vmatprep.subr.mxu0 0.0
        %1234 = vmatpush1.msra.mxu0 0.0
        %1235 = vmatprep.subr.mxu0 0.0
        %1236 = vmatpush1.msra.mxu0 0.0
        %1237 = vmatprep.subr.mxu0 0.0
        %1238 = vmatpush1.msra.mxu0 0.0
        %1239 = vmatprep.subr.mxu0 0.0
        %1240 = vmatpush1.msra.mxu0 0.0
        %1241 = vmatprep.subr.mxu0 0.0
        %1242 = vmatpush1.msra.mxu0 0.0
        %1243 = vmatprep.subr.mxu0 0.0
        %1244 = vmatpush1.msra.mxu0 0.0
        %1245 = vmatprep.subr.mxu0 0.0
        %1246 = vmatpush1.msra.mxu0 0.0
        %1247 = vmatprep.subr.mxu0 0.0
        %1248 = vmatpush1.msra.mxu0 0.0
        %1249 = vmatprep.subr.mxu0 0.0
        %1250 = vmatpush1.msra.mxu0 0.0
        %1251 = vmatprep.subr.mxu0 0.0
        %1252 = vmatpush1.msra.mxu0 0.0
        %1253 = vmatprep.subr.mxu0 0.0
        %1254 = vmatpush1.msra.mxu0 0.0
        %1255 = vmatprep.subr.mxu0 0.0
        %1256 = vmatpush1.msra.mxu0 0.0
        %1257 = vmatprep.subr.mxu0 0.0
        %1258 = vmatpush1.msra.mxu0 0.0
        %1259 = vmatprep.subr.mxu0 0.0
        %1260 = vmatpush1.msra.mxu0 0.0
        %1261 = vmatprep.mubr.f32.mxu0 0.0
        %1262 = vmatmul.mubr.f32.gmra.mrb[0].mxu0 %v1195
        %v1263 = vpop.f32.mrb[0].mxu0
        %v1264 = vadd.f32 0.0, %v1263
        %v1265 = vpop.f32.mrb[0].mxu0
        %1266 = vdwg.mxu0
        %vm1267 = vcmask 257024
        %1268 = vst.msk [vmem:[%s431] sm:$0xf] %vm1267, %v1264
        %s1269 = sand.u32 %s217, 1
        %s1270 = scalar_lea.sflag [#allocation4], %s1269
        %s1271 = sand.u32 %s217, 1
        %s1272 = smul.addr %s1271, 4
        %s1273 = scalar_lea.vmem [#allocation8], %s1272
        // Predicated region
        $region61: #{tpu_custom_call.1} parent=47 // pred_check
          %p1274 = pneg %p227
        $region62: #{tpu_custom_call.1} parent=47 // pred_check_branch
          %1276 = sbr.rel (%p1274) target = $region64
        $region63: #{tpu_custom_call.1} parent=47 // pred_region
          %s1278 = ssub.s32 64, 64
          %1279 = vsyncadd %s1270, %s1278
          %s1280 = smul.addr %s27, 64
          %s1281 = scalar_lea.hbm %s7, %s1280
          %s1283 = sshll.u32 %s1273, 4
          %s1284 = int_to_ptr.vmem [resolvable:$true] %s1283
          %1286 = dma.vmem_to_hbm [thread:$0]  %s1284, 64, %s1281, %s1270
        $region64: #{tpu_custom_call.1} parent=47 // pred_fallthru
          _
      $region48: #{tpu_custom_call.1} parent=5 // pred_fallthru
        _
      %p1287 = scmp.le.s32.totalorder 2, %s22
      // Predicated region
      $region65: #{tpu_custom_call.1} parent=5 // pred_check
        %p1288 = pneg %p1287
      $region66: #{tpu_custom_call.1} parent=5 // pred_check_branch
        %1290 = sbr.rel (%p1288) target = $region68
      $region67: #{tpu_custom_call.1} parent=5 // pred_region
        %s1291 = ssub.s32 %s22, 2
        // Predicated region
        $region69: #{tpu_custom_call.1} parent=67 // pred_check
          %p1292 = pneg %p233
        $region70: #{tpu_custom_call.1} parent=67 // pred_check_branch
          %1294 = sbr.rel (%p1292) target = $region72
        $region71: #{tpu_custom_call.1} parent=67 // pred_region
          %s1295 = sand.u32 %s218, 1
          %s1296 = scalar_lea.sflag [#allocation4], %s1295
          %s1297 = sand.u32 %s218, 1
          %s1298 = smul.addr %s1297, 4
          %s1299 = scalar_lea.vmem [#allocation8], %s1298
          %1300 = dma.done %s1296, 64
        $region72: #{tpu_custom_call.1} parent=67 // pred_fallthru
          _
      $region68: #{tpu_custom_call.1} parent=5 // pred_fallthru
        _
    $region6: #{tpu_custom_call.1} parent=1 // loop_footer
      %s26 = sadd.s32 1, %s22
    $region7: #{tpu_custom_call.1} parent=1 // loop_footer_branch
      %21 = sbr.rel target = $region3
    $region8: #{tpu_custom_call.1} parent=1 // loop_exit
      _
    %1301 = vsyncpa [#allocation3], 1
    %s1302 = scalar_lea.sflag [#allocation3], 1
    %1303 = vsyncpa %s1302, 1
    %1304 = vsyncpa [#allocation6], 1
    %s1305 = scalar_lea.sflag [#allocation6], 1
    %1306 = vsyncpa %s1305, 1
    %1307 = vsyncpa [#allocation4], 1
    %s1308 = scalar_lea.sflag [#allocation4], 1
    %1309 = vsyncpa %s1308, 1

</llo_original>
